<compile_context>
chip_gen: v7x
topology: tpu7x:2x2x1
jax: 0.10.0
libtpu: 0.0.40
codegen_flags: <defaults>
</compile_context>

<pallas_src>
import math

import jax
import jax.numpy as jnp
from jax import lax
from jax.experimental import pallas as pl
from jax.experimental.pallas import tpu as pltpu

# -------------------- config (small shapes consistent with the module) ------
V = 50                 # len(vocab)
E = 16                 # text_embed_dim
NF = 16                # num_filter_maps
FILTER_SIZES = (3, 5)  # conf.MultiResCNN.kernel_size
FILTER_NUM = len(FILTER_SIZES)
CONV_LAYER = 1         # conv_dict[1] = [E, NF] -> one ResidualBlock per channel
D = FILTER_NUM * NF    # output-layer input size
Y = 8                  # len(label)
B = 2                  # batch
L = 16                 # sequence length
PER_CH = 8             # weight tensors per conv channel


# ------------------------------- kernel --------------------------------------
def _conv1d_same(x, w_ref, ks):
    """'same' Conv1d on a seq-major slab via one im2col matmul.

    x: [L, Cin] value; w_ref: [ks*Cin, Cout] with
    w[t*Cin + ci, co] == torch_conv_weight[co, ci, t].
    """
    pad = ks // 2
    cin = x.shape[1]
    zp = jnp.zeros((pad, cin), jnp.float32)
    xp = jnp.concatenate([zp, x, zp], axis=0)                              # [L+2p, Cin]
    cols = jnp.concatenate([xp[t:t + L, :] for t in range(ks)], axis=-1)   # [L, ks*Cin]
    return jnp.dot(cols, w_ref[...], preferred_element_type=jnp.float32)   # [L, Cout]


def multirescnn_kernel(ids_ref, embed_ref, uw_ref, fw_ref, fb_ref, *rest):
    *ch_refs, o_ref, emb_scr = rest
    b = pl.program_id(0)

    # --- embedding gather (word_rep; dropout_embed = identity in eval) ---
    # ids live in SMEM (scalar prefetch); embed table is a resident VMEM input
    # shaped [V, 1, E] so whole rows are fetched by dynamic leading-axis index.
    for l in range(L):
        emb_scr[pl.ds(l, 1), :] = embed_ref[ids_ref[b, l]]                 # [1, E]
    x_emb = emb_scr[...]                                                   # [L, E]

    # --- multi-resolution conv channels ---
    outs = []
    for ci, ks in enumerate(FILTER_SIZES):
        wb, bb, w1, b1, w2, b2, ws, bs = ch_refs[ci * PER_CH:(ci + 1) * PER_CH]
        # baseconv (bias=True) then tanh  (forward: tanh(md(tmp)) for idx==0)
        h0 = jnp.tanh(_conv1d_same(x_emb, wb, ks) + bb[...])               # [L, E]
        # ResidualBlock.left: conv -> BN(folded) -> tanh -> conv -> BN(folded)
        left = jnp.tanh(_conv1d_same(h0, w1, ks) + b1[...])                # [L, NF]
        left = _conv1d_same(left, w2, ks) + b2[...]                        # [L, NF]
        # ResidualBlock.shortcut: 1x1 conv -> BN(folded)
        sc = jnp.dot(h0, ws[...], preferred_element_type=jnp.float32) + bs[...]
        # out = tanh(left + shortcut); residual dropout = identity in eval
        outs.append(jnp.tanh(left + sc))                                   # [L, NF]
    x_cat = jnp.concatenate(outs, axis=-1)                                 # [L, D]

    # --- MultiResCNNOutputLayer ---
    # alpha = softmax(U.weight @ x^T, dim=L); transpose-free NT contraction.
    logits = lax.dot_general(uw_ref[...], x_cat,
                             dimension_numbers=(((1,), (1,)), ((), ())),
                             preferred_element_type=jnp.float32)           # [Y, L]
    mx = jnp.max(logits, axis=-1, keepdims=True)
    e = jnp.exp(logits - mx)
    alpha = e * pl.reciprocal(jnp.sum(e, axis=-1, keepdims=True), approx=True)
    m_ctx = jnp.dot(alpha, x_cat, preferred_element_type=jnp.float32)      # [Y, D]
    y = jnp.sum(fw_ref[...] * m_ctx, axis=-1) + fb_ref[...]                # [1, Y]
    o_ref[...] = y.reshape(1, 1, Y)


# ------------------------------- wrapper --------------------------------------
def multirescnn_pallas(params, ids):
    const2 = lambda b, ids: (0, 0)
    const3 = lambda b, ids: (0, 0, 0)

    args = [ids, params["embed"], params["U_w"], params["final_w"], params["final_b"]]
    in_specs = [
        pl.BlockSpec((V, 1, E), const3),   # embedding table (resident)
        pl.BlockSpec((Y, D), const2),      # output_layer.U.weight
        pl.BlockSpec((Y, D), const2),      # output_layer.final.weight
        pl.BlockSpec((1, Y), const2),      # output_layer.final.bias
    ]
    for ci, ks in enumerate(FILTER_SIZES):
        ch = params["channels"][ci]
        args += [ch["wb"], ch["bb"], ch["w1"], ch["b1"],
                 ch["w2"], ch["b2"], ch["ws"], ch["bs"]]
        in_specs += [
            pl.BlockSpec((ks * E, E), const2),  pl.BlockSpec((1, E), const2),
            pl.BlockSpec((ks * E, NF), const2), pl.BlockSpec((1, NF), const2),
            pl.BlockSpec((ks * NF, NF), const2), pl.BlockSpec((1, NF), const2),
            pl.BlockSpec((E, NF), const2),      pl.BlockSpec((1, NF), const2),
        ]

    out = pl.pallas_call(
        multirescnn_kernel,
        out_shape=jax.ShapeDtypeStruct((B, 1, Y), jnp.float32),
        grid_spec=pltpu.PrefetchScalarGridSpec(
            num_scalar_prefetch=1,            # ids -> SMEM, in-kernel gather
            grid=(B,),
            in_specs=in_specs,
            out_specs=pl.BlockSpec((1, 1, Y), lambda b, ids: (b, 0, 0)),
            scratch_shapes=[pltpu.VMEM((L, E), jnp.float32)],
        ),
        compiler_params=pltpu.CompilerParams(
            dimension_semantics=("parallel",)),   # each batch item independent
    )(*args)
    return out.reshape(B, Y)


multirescnn_forward = jax.jit(multirescnn_pallas)


# ------------------------- deterministic parameters ---------------------------
def init_params(key):
    keys = iter(jax.random.split(key, 64))

    def u(shape, fan_in):
        bound = 1.0 / math.sqrt(fan_in)
        return jax.random.uniform(next(keys), shape, jnp.float32, -bound, bound)

    def xavier(shape):
        fan_out, fan_in = shape
        bound = math.sqrt(6.0 / (fan_in + fan_out))
        return jax.random.uniform(next(keys), shape, jnp.float32, -bound, bound)

    def bn_fold(w, cout):
        """Fold eval-mode BatchNorm1d into the preceding bias-free conv weight."""
        gamma = jax.random.uniform(next(keys), (cout,), jnp.float32, 0.5, 1.5)
        beta = jax.random.normal(next(keys), (cout,), jnp.float32) * 0.1
        mean = jax.random.normal(next(keys), (cout,), jnp.float32) * 0.1
        var = jax.random.uniform(next(keys), (cout,), jnp.float32, 0.5, 1.5)
        scale = gamma / jnp.sqrt(var + 1e-5)
        return w * scale[None, :], (beta - mean * scale).reshape(1, cout)

    channels = []
    for ks in FILTER_SIZES:
        # conv weights stored [ks*Cin, Cout]  (== torch weight[:, :, t].T per tap)
        wb = xavier((ks * E, E))                    # baseconv (xavier in torch)
        bb = u((1, E), E * ks)                      # baseconv bias
        w1, b1 = bn_fold(u((ks * E, NF), E * ks), NF)    # left conv1 + BN1
        w2, b2 = bn_fold(u((ks * NF, NF), NF * ks), NF)  # left conv2 + BN2
        ws, bs = bn_fold(u((E, NF), E), NF)              # 1x1 shortcut conv + BN
        channels.append(dict(wb=wb, bb=bb, w1=w1, b1=b1,
                             w2=w2, b2=b2, ws=ws, bs=bs))

    return {
        # stored [V, 1, E] so the kernel can dynamic-index whole embedding rows
        "embed":   (jax.random.normal(next(keys), (V, E), jnp.float32) * 0.1
                    ).reshape(V, 1, E),
        "U_w":     xavier((Y, D)),
        "final_w": xavier((Y, D)),
        "final_b": u((1, Y), D),
        "channels": channels,
    }


# ----------------------------------- main --------------------------------------
if __name__ == "__main__":
    root = jax.random.PRNGKey(0)
    kp, kid = jax.random.split(root)

    params = init_params(kp)
    ids = jax.random.randint(kid, (B, L), 0, V, dtype=jnp.int32)
    # TODO(synk): `mask`, `G`, `target` are unused by the reference forward.

    out = multirescnn_forward(params, ids)
    jax.block_until_ready(out)
    assert out.shape == (B, Y) and out.dtype == jnp.float32
    assert bool(jnp.all(jnp.isfinite(out)))
    print("KERNEL_OK")
</pallas_src>

<mosaic_0001>
module attributes {stable_mosaic.version = 11 : i64} {
  func.func @multirescnn_kernel(%arg0: i32, %arg1: memref<2x16xi32, #tpu.memory_space<smem>>, %arg2: memref<50x1x16xf32, #tpu.memory_space<vmem>>, %arg3: memref<8x32xf32, #tpu.memory_space<vmem>>, %arg4: memref<8x32xf32, #tpu.memory_space<vmem>>, %arg5: memref<1x8xf32, #tpu.memory_space<vmem>>, %arg6: memref<48x16xf32, #tpu.memory_space<vmem>>, %arg7: memref<1x16xf32, #tpu.memory_space<vmem>>, %arg8: memref<48x16xf32, #tpu.memory_space<vmem>>, %arg9: memref<1x16xf32, #tpu.memory_space<vmem>>, %arg10: memref<48x16xf32, #tpu.memory_space<vmem>>, %arg11: memref<1x16xf32, #tpu.memory_space<vmem>>, %arg12: memref<16x16xf32, #tpu.memory_space<vmem>>, %arg13: memref<1x16xf32, #tpu.memory_space<vmem>>, %arg14: memref<80x16xf32, #tpu.memory_space<vmem>>, %arg15: memref<1x16xf32, #tpu.memory_space<vmem>>, %arg16: memref<80x16xf32, #tpu.memory_space<vmem>>, %arg17: memref<1x16xf32, #tpu.memory_space<vmem>>, %arg18: memref<80x16xf32, #tpu.memory_space<vmem>>, %arg19: memref<1x16xf32, #tpu.memory_space<vmem>>, %arg20: memref<16x16xf32, #tpu.memory_space<vmem>>, %arg21: memref<1x16xf32, #tpu.memory_space<vmem>>, %arg22: memref<1x1x8xf32, #tpu.memory_space<vmem>>, %arg23: memref<16x16xf32, #tpu.memory_space<vmem>>) attributes {dimension_semantics = [#tpu.dimension_semantics<parallel>], iteration_bounds = array<i64: 2>, scalar_prefetch = 1 : i64, scratch_operands = 1 : i64, tpu.core_type = #tpu.core_type<tc>, window_params = [{pipeline_mode = #tpu.pipeline_mode<synchronous>, transform_indices = @transform_0, window_bounds = array<i64: 50, 1, 16>}, {pipeline_mode = #tpu.pipeline_mode<synchronous>, transform_indices = @transform_1, window_bounds = array<i64: 8, 32>}, {pipeline_mode = #tpu.pipeline_mode<synchronous>, transform_indices = @transform_2, window_bounds = array<i64: 8, 32>}, {pipeline_mode = #tpu.pipeline_mode<synchronous>, transform_indices = @transform_3, window_bounds = array<i64: 1, 8>}, {pipeline_mode = #tpu.pipeline_mode<synchronous>, transform_indices = @transform_4, window_bounds = array<i64: 48, 16>}, {pipeline_mode = #tpu.pipeline_mode<synchronous>, transform_indices = @transform_5, window_bounds = array<i64: 1, 16>}, {pipeline_mode = #tpu.pipeline_mode<synchronous>, transform_indices = @transform_6, window_bounds = array<i64: 48, 16>}, {pipeline_mode = #tpu.pipeline_mode<synchronous>, transform_indices = @transform_7, window_bounds = array<i64: 1, 16>}, {pipeline_mode = #tpu.pipeline_mode<synchronous>, transform_indices = @transform_8, window_bounds = array<i64: 48, 16>}, {pipeline_mode = #tpu.pipeline_mode<synchronous>, transform_indices = @transform_9, window_bounds = array<i64: 1, 16>}, {pipeline_mode = #tpu.pipeline_mode<synchronous>, transform_indices = @transform_10, window_bounds = array<i64: 16, 16>}, {pipeline_mode = #tpu.pipeline_mode<synchronous>, transform_indices = @transform_11, window_bounds = array<i64: 1, 16>}, {pipeline_mode = #tpu.pipeline_mode<synchronous>, transform_indices = @transform_12, window_bounds = array<i64: 80, 16>}, {pipeline_mode = #tpu.pipeline_mode<synchronous>, transform_indices = @transform_13, window_bounds = array<i64: 1, 16>}, {pipeline_mode = #tpu.pipeline_mode<synchronous>, transform_indices = @transform_14, window_bounds = array<i64: 80, 16>}, {pipeline_mode = #tpu.pipeline_mode<synchronous>, transform_indices = @transform_15, window_bounds = array<i64: 1, 16>}, {pipeline_mode = #tpu.pipeline_mode<synchronous>, transform_indices = @transform_16, window_bounds = array<i64: 80, 16>}, {pipeline_mode = #tpu.pipeline_mode<synchronous>, transform_indices = @transform_17, window_bounds = array<i64: 1, 16>}, {pipeline_mode = #tpu.pipeline_mode<synchronous>, transform_indices = @transform_18, window_bounds = array<i64: 16, 16>}, {pipeline_mode = #tpu.pipeline_mode<synchronous>, transform_indices = @transform_19, window_bounds = array<i64: 1, 16>}, {transform_indices = @transform_20, window_bounds = array<i64: 1, 1, 8>}]} {
    %0 = arith.index_cast %arg0 : i32 to index
    %c0 = arith.constant 0 : index
    %1 = memref.load %arg1[%0, %c0] : memref<2x16xi32, #tpu.memory_space<smem>>
    %2 = arith.index_cast %1 : i32 to index
    %c0_0 = arith.constant 0 : index
    %c0_1 = arith.constant 0 : index
    %3 = vector.load %arg2[%2, %c0_0, %c0_1] : memref<50x1x16xf32, #tpu.memory_space<vmem>>, vector<1x1x16xf32>
    %4 = vector.shape_cast %3 : vector<1x1x16xf32> to vector<1x16xf32>
    %c0_2 = arith.constant 0 : index
    %c0_3 = arith.constant 0 : index
    %5 = vector.load %arg23[%c0_2, %c0_3] : memref<16x16xf32, #tpu.memory_space<vmem>>, vector<1x16xf32>
    tpu.vector_store %arg23[%c0_2, %c0_3], %4 {strides = array<i32>} : memref<16x16xf32, #tpu.memory_space<vmem>>, vector<1x16xf32>,
    %6 = arith.index_cast %arg0 : i32 to index
    %c1 = arith.constant 1 : index
    %7 = memref.load %arg1[%6, %c1] : memref<2x16xi32, #tpu.memory_space<smem>>
    %8 = arith.index_cast %7 : i32 to index
    %c0_4 = arith.constant 0 : index
    %c0_5 = arith.constant 0 : index
    %9 = vector.load %arg2[%8, %c0_4, %c0_5] : memref<50x1x16xf32, #tpu.memory_space<vmem>>, vector<1x1x16xf32>
    %10 = vector.shape_cast %9 : vector<1x1x16xf32> to vector<1x16xf32>
    %c1_6 = arith.constant 1 : index
    %c0_7 = arith.constant 0 : index
    %11 = vector.load %arg23[%c1_6, %c0_7] : memref<16x16xf32, #tpu.memory_space<vmem>>, vector<1x16xf32>
    tpu.vector_store %arg23[%c1_6, %c0_7], %10 {strides = array<i32>} : memref<16x16xf32, #tpu.memory_space<vmem>>, vector<1x16xf32>,
    %12 = arith.index_cast %arg0 : i32 to index
    %c2 = arith.constant 2 : index
    %13 = memref.load %arg1[%12, %c2] : memref<2x16xi32, #tpu.memory_space<smem>>
    %14 = arith.index_cast %13 : i32 to index
    %c0_8 = arith.constant 0 : index
    %c0_9 = arith.constant 0 : index
    %15 = vector.load %arg2[%14, %c0_8, %c0_9] : memref<50x1x16xf32, #tpu.memory_space<vmem>>, vector<1x1x16xf32>
    %16 = vector.shape_cast %15 : vector<1x1x16xf32> to vector<1x16xf32>
    %c2_10 = arith.constant 2 : index
    %c0_11 = arith.constant 0 : index
    %17 = vector.load %arg23[%c2_10, %c0_11] : memref<16x16xf32, #tpu.memory_space<vmem>>, vector<1x16xf32>
    tpu.vector_store %arg23[%c2_10, %c0_11], %16 {strides = array<i32>} : memref<16x16xf32, #tpu.memory_space<vmem>>, vector<1x16xf32>,
    %18 = arith.index_cast %arg0 : i32 to index
    %c3 = arith.constant 3 : index
    %19 = memref.load %arg1[%18, %c3] : memref<2x16xi32, #tpu.memory_space<smem>>
    %20 = arith.index_cast %19 : i32 to index
    %c0_12 = arith.constant 0 : index
    %c0_13 = arith.constant 0 : index
    %21 = vector.load %arg2[%20, %c0_12, %c0_13] : memref<50x1x16xf32, #tpu.memory_space<vmem>>, vector<1x1x16xf32>
    %22 = vector.shape_cast %21 : vector<1x1x16xf32> to vector<1x16xf32>
    %c3_14 = arith.constant 3 : index
    %c0_15 = arith.constant 0 : index
    %23 = vector.load %arg23[%c3_14, %c0_15] : memref<16x16xf32, #tpu.memory_space<vmem>>, vector<1x16xf32>
    tpu.vector_store %arg23[%c3_14, %c0_15], %22 {strides = array<i32>} : memref<16x16xf32, #tpu.memory_space<vmem>>, vector<1x16xf32>,
    %24 = arith.index_cast %arg0 : i32 to index
    %c4 = arith.constant 4 : index
    %25 = memref.load %arg1[%24, %c4] : memref<2x16xi32, #tpu.memory_space<smem>>
    %26 = arith.index_cast %25 : i32 to index
    %c0_16 = arith.constant 0 : index
    %c0_17 = arith.constant 0 : index
    %27 = vector.load %arg2[%26, %c0_16, %c0_17] : memref<50x1x16xf32, #tpu.memory_space<vmem>>, vector<1x1x16xf32>
    %28 = vector.shape_cast %27 : vector<1x1x16xf32> to vector<1x16xf32>
    %c4_18 = arith.constant 4 : index
    %c0_19 = arith.constant 0 : index
    %29 = vector.load %arg23[%c4_18, %c0_19] : memref<16x16xf32, #tpu.memory_space<vmem>>, vector<1x16xf32>
    tpu.vector_store %arg23[%c4_18, %c0_19], %28 {strides = array<i32>} : memref<16x16xf32, #tpu.memory_space<vmem>>, vector<1x16xf32>,
    %30 = arith.index_cast %arg0 : i32 to index
    %c5 = arith.constant 5 : index
    %31 = memref.load %arg1[%30, %c5] : memref<2x16xi32, #tpu.memory_space<smem>>
    %32 = arith.index_cast %31 : i32 to index
    %c0_20 = arith.constant 0 : index
    %c0_21 = arith.constant 0 : index
    %33 = vector.load %arg2[%32, %c0_20, %c0_21] : memref<50x1x16xf32, #tpu.memory_space<vmem>>, vector<1x1x16xf32>
    %34 = vector.shape_cast %33 : vector<1x1x16xf32> to vector<1x16xf32>
    %c5_22 = arith.constant 5 : index
    %c0_23 = arith.constant 0 : index
    %35 = vector.load %arg23[%c5_22, %c0_23] : memref<16x16xf32, #tpu.memory_space<vmem>>, vector<1x16xf32>
    tpu.vector_store %arg23[%c5_22, %c0_23], %34 {strides = array<i32>} : memref<16x16xf32, #tpu.memory_space<vmem>>, vector<1x16xf32>,
    %36 = arith.index_cast %arg0 : i32 to index
    %c6 = arith.constant 6 : index
    %37 = memref.load %arg1[%36, %c6] : memref<2x16xi32, #tpu.memory_space<smem>>
    %38 = arith.index_cast %37 : i32 to index
    %c0_24 = arith.constant 0 : index
    %c0_25 = arith.constant 0 : index
    %39 = vector.load %arg2[%38, %c0_24, %c0_25] : memref<50x1x16xf32, #tpu.memory_space<vmem>>, vector<1x1x16xf32>
    %40 = vector.shape_cast %39 : vector<1x1x16xf32> to vector<1x16xf32>
    %c6_26 = arith.constant 6 : index
    %c0_27 = arith.constant 0 : index
    %41 = vector.load %arg23[%c6_26, %c0_27] : memref<16x16xf32, #tpu.memory_space<vmem>>, vector<1x16xf32>
    tpu.vector_store %arg23[%c6_26, %c0_27], %40 {strides = array<i32>} : memref<16x16xf32, #tpu.memory_space<vmem>>, vector<1x16xf32>,
    %42 = arith.index_cast %arg0 : i32 to index
    %c7 = arith.constant 7 : index
    %43 = memref.load %arg1[%42, %c7] : memref<2x16xi32, #tpu.memory_space<smem>>
    %44 = arith.index_cast %43 : i32 to index
    %c0_28 = arith.constant 0 : index
    %c0_29 = arith.constant 0 : index
    %45 = vector.load %arg2[%44, %c0_28, %c0_29] : memref<50x1x16xf32, #tpu.memory_space<vmem>>, vector<1x1x16xf32>
    %46 = vector.shape_cast %45 : vector<1x1x16xf32> to vector<1x16xf32>
    %c7_30 = arith.constant 7 : index
    %c0_31 = arith.constant 0 : index
    %47 = vector.load %arg23[%c7_30, %c0_31] : memref<16x16xf32, #tpu.memory_space<vmem>>, vector<1x16xf32>
    tpu.vector_store %arg23[%c7_30, %c0_31], %46 {strides = array<i32>} : memref<16x16xf32, #tpu.memory_space<vmem>>, vector<1x16xf32>,
    %48 = arith.index_cast %arg0 : i32 to index
    %c8 = arith.constant 8 : index
    %49 = memref.load %arg1[%48, %c8] : memref<2x16xi32, #tpu.memory_space<smem>>
    %50 = arith.index_cast %49 : i32 to index
    %c0_32 = arith.constant 0 : index
    %c0_33 = arith.constant 0 : index
    %51 = vector.load %arg2[%50, %c0_32, %c0_33] : memref<50x1x16xf32, #tpu.memory_space<vmem>>, vector<1x1x16xf32>
    %52 = vector.shape_cast %51 : vector<1x1x16xf32> to vector<1x16xf32>
    %c8_34 = arith.constant 8 : index
    %c0_35 = arith.constant 0 : index
    %53 = vector.load %arg23[%c8_34, %c0_35] : memref<16x16xf32, #tpu.memory_space<vmem>>, vector<1x16xf32>
    tpu.vector_store %arg23[%c8_34, %c0_35], %52 {strides = array<i32>} : memref<16x16xf32, #tpu.memory_space<vmem>>, vector<1x16xf32>,
    %54 = arith.index_cast %arg0 : i32 to index
    %c9 = arith.constant 9 : index
    %55 = memref.load %arg1[%54, %c9] : memref<2x16xi32, #tpu.memory_space<smem>>
    %56 = arith.index_cast %55 : i32 to index
    %c0_36 = arith.constant 0 : index
    %c0_37 = arith.constant 0 : index
    %57 = vector.load %arg2[%56, %c0_36, %c0_37] : memref<50x1x16xf32, #tpu.memory_space<vmem>>, vector<1x1x16xf32>
    %58 = vector.shape_cast %57 : vector<1x1x16xf32> to vector<1x16xf32>
    %c9_38 = arith.constant 9 : index
    %c0_39 = arith.constant 0 : index
    %59 = vector.load %arg23[%c9_38, %c0_39] : memref<16x16xf32, #tpu.memory_space<vmem>>, vector<1x16xf32>
    tpu.vector_store %arg23[%c9_38, %c0_39], %58 {strides = array<i32>} : memref<16x16xf32, #tpu.memory_space<vmem>>, vector<1x16xf32>,
    %60 = arith.index_cast %arg0 : i32 to index
    %c10 = arith.constant 10 : index
    %61 = memref.load %arg1[%60, %c10] : memref<2x16xi32, #tpu.memory_space<smem>>
    %62 = arith.index_cast %61 : i32 to index
    %c0_40 = arith.constant 0 : index
    %c0_41 = arith.constant 0 : index
    %63 = vector.load %arg2[%62, %c0_40, %c0_41] : memref<50x1x16xf32, #tpu.memory_space<vmem>>, vector<1x1x16xf32>
    %64 = vector.shape_cast %63 : vector<1x1x16xf32> to vector<1x16xf32>
    %c10_42 = arith.constant 10 : index
    %c0_43 = arith.constant 0 : index
    %65 = vector.load %arg23[%c10_42, %c0_43] : memref<16x16xf32, #tpu.memory_space<vmem>>, vector<1x16xf32>
    tpu.vector_store %arg23[%c10_42, %c0_43], %64 {strides = array<i32>} : memref<16x16xf32, #tpu.memory_space<vmem>>, vector<1x16xf32>,
    %66 = arith.index_cast %arg0 : i32 to index
    %c11 = arith.constant 11 : index
    %67 = memref.load %arg1[%66, %c11] : memref<2x16xi32, #tpu.memory_space<smem>>
    %68 = arith.index_cast %67 : i32 to index
    %c0_44 = arith.constant 0 : index
    %c0_45 = arith.constant 0 : index
    %69 = vector.load %arg2[%68, %c0_44, %c0_45] : memref<50x1x16xf32, #tpu.memory_space<vmem>>, vector<1x1x16xf32>
    %70 = vector.shape_cast %69 : vector<1x1x16xf32> to vector<1x16xf32>
    %c11_46 = arith.constant 11 : index
    %c0_47 = arith.constant 0 : index
    %71 = vector.load %arg23[%c11_46, %c0_47] : memref<16x16xf32, #tpu.memory_space<vmem>>, vector<1x16xf32>
    tpu.vector_store %arg23[%c11_46, %c0_47], %70 {strides = array<i32>} : memref<16x16xf32, #tpu.memory_space<vmem>>, vector<1x16xf32>,
    %72 = arith.index_cast %arg0 : i32 to index
    %c12 = arith.constant 12 : index
    %73 = memref.load %arg1[%72, %c12] : memref<2x16xi32, #tpu.memory_space<smem>>
    %74 = arith.index_cast %73 : i32 to index
    %c0_48 = arith.constant 0 : index
    %c0_49 = arith.constant 0 : index
    %75 = vector.load %arg2[%74, %c0_48, %c0_49] : memref<50x1x16xf32, #tpu.memory_space<vmem>>, vector<1x1x16xf32>
    %76 = vector.shape_cast %75 : vector<1x1x16xf32> to vector<1x16xf32>
    %c12_50 = arith.constant 12 : index
    %c0_51 = arith.constant 0 : index
    %77 = vector.load %arg23[%c12_50, %c0_51] : memref<16x16xf32, #tpu.memory_space<vmem>>, vector<1x16xf32>
    tpu.vector_store %arg23[%c12_50, %c0_51], %76 {strides = array<i32>} : memref<16x16xf32, #tpu.memory_space<vmem>>, vector<1x16xf32>,
    %78 = arith.index_cast %arg0 : i32 to index
    %c13 = arith.constant 13 : index
    %79 = memref.load %arg1[%78, %c13] : memref<2x16xi32, #tpu.memory_space<smem>>
    %80 = arith.index_cast %79 : i32 to index
    %c0_52 = arith.constant 0 : index
    %c0_53 = arith.constant 0 : index
    %81 = vector.load %arg2[%80, %c0_52, %c0_53] : memref<50x1x16xf32, #tpu.memory_space<vmem>>, vector<1x1x16xf32>
    %82 = vector.shape_cast %81 : vector<1x1x16xf32> to vector<1x16xf32>
    %c13_54 = arith.constant 13 : index
    %c0_55 = arith.constant 0 : index
    %83 = vector.load %arg23[%c13_54, %c0_55] : memref<16x16xf32, #tpu.memory_space<vmem>>, vector<1x16xf32>
    tpu.vector_store %arg23[%c13_54, %c0_55], %82 {strides = array<i32>} : memref<16x16xf32, #tpu.memory_space<vmem>>, vector<1x16xf32>,
    %84 = arith.index_cast %arg0 : i32 to index
    %c14 = arith.constant 14 : index
    %85 = memref.load %arg1[%84, %c14] : memref<2x16xi32, #tpu.memory_space<smem>>
    %86 = arith.index_cast %85 : i32 to index
    %c0_56 = arith.constant 0 : index
    %c0_57 = arith.constant 0 : index
    %87 = vector.load %arg2[%86, %c0_56, %c0_57] : memref<50x1x16xf32, #tpu.memory_space<vmem>>, vector<1x1x16xf32>
    %88 = vector.shape_cast %87 : vector<1x1x16xf32> to vector<1x16xf32>
    %c14_58 = arith.constant 14 : index
    %c0_59 = arith.constant 0 : index
    %89 = vector.load %arg23[%c14_58, %c0_59] : memref<16x16xf32, #tpu.memory_space<vmem>>, vector<1x16xf32>
    tpu.vector_store %arg23[%c14_58, %c0_59], %88 {strides = array<i32>} : memref<16x16xf32, #tpu.memory_space<vmem>>, vector<1x16xf32>,
    %90 = arith.index_cast %arg0 : i32 to index
    %c15 = arith.constant 15 : index
    %91 = memref.load %arg1[%90, %c15] : memref<2x16xi32, #tpu.memory_space<smem>>
    %92 = arith.index_cast %91 : i32 to index
    %c0_60 = arith.constant 0 : index
    %c0_61 = arith.constant 0 : index
    %93 = vector.load %arg2[%92, %c0_60, %c0_61] : memref<50x1x16xf32, #tpu.memory_space<vmem>>, vector<1x1x16xf32>
    %94 = vector.shape_cast %93 : vector<1x1x16xf32> to vector<1x16xf32>
    %c15_62 = arith.constant 15 : index
    %c0_63 = arith.constant 0 : index
    %95 = vector.load %arg23[%c15_62, %c0_63] : memref<16x16xf32, #tpu.memory_space<vmem>>, vector<1x16xf32>
    tpu.vector_store %arg23[%c15_62, %c0_63], %94 {strides = array<i32>} : memref<16x16xf32, #tpu.memory_space<vmem>>, vector<1x16xf32>,
    %c0_64 = arith.constant 0 : index
    %c0_65 = arith.constant 0 : index
    %96 = vector.load %arg23[%c0_64, %c0_65] : memref<16x16xf32, #tpu.memory_space<vmem>>, vector<16x16xf32>
    %cst = arith.constant 0.000000e+00 : f32
    %97 = vector.broadcast %cst : f32 to vector<1x16xf32>
    %98 = tpu.concatenate %97, %96, %97 in 0 : vector<1x16xf32>, vector<16x16xf32>, vector<1x16xf32> -> vector<18x16xf32>
    %99 = vector.extract_strided_slice %98 {offsets = [0, 0], sizes = [16, 16], strides = [1, 1]} : vector<18x16xf32> to vector<16x16xf32>
    %100 = vector.extract_strided_slice %98 {offsets = [1, 0], sizes = [16, 16], strides = [1, 1]} : vector<18x16xf32> to vector<16x16xf32>
    %101 = vector.extract_strided_slice %98 {offsets = [2, 0], sizes = [16, 16], strides = [1, 1]} : vector<18x16xf32> to vector<16x16xf32>
    %102 = tpu.concatenate %99, %100, %101 in 1 : vector<16x16xf32>, vector<16x16xf32>, vector<16x16xf32> -> vector<16x48xf32>
    %c0_66 = arith.constant 0 : index
    %c0_67 = arith.constant 0 : index
    %103 = vector.load %arg6[%c0_66, %c0_67] : memref<48x16xf32, #tpu.memory_space<vmem>>, vector<48x16xf32>
    %cst_68 = arith.constant dense<0.000000e+00> : vector<16x16xf32>
    %104 = tpu.matmul %102, %103, %cst_68 {dimension_numbers = #tpu.dot_dimension_numbers<[1], [0], [0], [1], [0, 0, 1, 1], [], []>} : vector<16x48xf32>, vector<48x16xf32>, vector<16x16xf32> -> vector<16x16xf32>
    %c0_69 = arith.constant 0 : index
    %c0_70 = arith.constant 0 : index
    %105 = vector.load %arg7[%c0_69, %c0_70] : memref<1x16xf32, #tpu.memory_space<vmem>>, vector<1x16xf32>
    %106 = vector.broadcast %105 : vector<1x16xf32> to vector<16x16xf32>
    %107 = arith.addf %104, %106 : vector<16x16xf32>
    %108 = math.tanh %107 : vector<16x16xf32>
    %cst_71 = arith.constant 0.000000e+00 : f32
    %109 = vector.broadcast %cst_71 : f32 to vector<1x16xf32>
    %110 = tpu.concatenate %109, %108, %109 in 0 : vector<1x16xf32>, vector<16x16xf32>, vector<1x16xf32> -> vector<18x16xf32>
    %111 = vector.extract_strided_slice %110 {offsets = [0, 0], sizes = [16, 16], strides = [1, 1]} : vector<18x16xf32> to vector<16x16xf32>
    %112 = vector.extract_strided_slice %110 {offsets = [1, 0], sizes = [16, 16], strides = [1, 1]} : vector<18x16xf32> to vector<16x16xf32>
    %113 = vector.extract_strided_slice %110 {offsets = [2, 0], sizes = [16, 16], strides = [1, 1]} : vector<18x16xf32> to vector<16x16xf32>
    %114 = tpu.concatenate %111, %112, %113 in 1 : vector<16x16xf32>, vector<16x16xf32>, vector<16x16xf32> -> vector<16x48xf32>
    %c0_72 = arith.constant 0 : index
    %c0_73 = arith.constant 0 : index
    %115 = vector.load %arg8[%c0_72, %c0_73] : memref<48x16xf32, #tpu.memory_space<vmem>>, vector<48x16xf32>
    %cst_74 = arith.constant dense<0.000000e+00> : vector<16x16xf32>
    %116 = tpu.matmul %114, %115, %cst_74 {dimension_numbers = #tpu.dot_dimension_numbers<[1], [0], [0], [1], [0, 0, 1, 1], [], []>} : vector<16x48xf32>, vector<48x16xf32>, vector<16x16xf32> -> vector<16x16xf32>
    %c0_75 = arith.constant 0 : index
    %c0_76 = arith.constant 0 : index
    %117 = vector.load %arg9[%c0_75, %c0_76] : memref<1x16xf32, #tpu.memory_space<vmem>>, vector<1x16xf32>
    %118 = vector.broadcast %117 : vector<1x16xf32> to vector<16x16xf32>
    %119 = arith.addf %116, %118 : vector<16x16xf32>
    %120 = math.tanh %119 : vector<16x16xf32>
    %cst_77 = arith.constant 0.000000e+00 : f32
    %121 = vector.broadcast %cst_77 : f32 to vector<1x16xf32>
    %122 = tpu.concatenate %121, %120, %121 in 0 : vector<1x16xf32>, vector<16x16xf32>, vector<1x16xf32> -> vector<18x16xf32>
    %123 = vector.extract_strided_slice %122 {offsets = [0, 0], sizes = [16, 16], strides = [1, 1]} : vector<18x16xf32> to vector<16x16xf32>
    %124 = vector.extract_strided_slice %122 {offsets = [1, 0], sizes = [16, 16], strides = [1, 1]} : vector<18x16xf32> to vector<16x16xf32>
    %125 = vector.extract_strided_slice %122 {offsets = [2, 0], sizes = [16, 16], strides = [1, 1]} : vector<18x16xf32> to vector<16x16xf32>
    %126 = tpu.concatenate %123, %124, %125 in 1 : vector<16x16xf32>, vector<16x16xf32>, vector<16x16xf32> -> vector<16x48xf32>
    %c0_78 = arith.constant 0 : index
    %c0_79 = arith.constant 0 : index
    %127 = vector.load %arg10[%c0_78, %c0_79] : memref<48x16xf32, #tpu.memory_space<vmem>>, vector<48x16xf32>
    %cst_80 = arith.constant dense<0.000000e+00> : vector<16x16xf32>
    %128 = tpu.matmul %126, %127, %cst_80 {dimension_numbers = #tpu.dot_dimension_numbers<[1], [0], [0], [1], [0, 0, 1, 1], [], []>} : vector<16x48xf32>, vector<48x16xf32>, vector<16x16xf32> -> vector<16x16xf32>
    %c0_81 = arith.constant 0 : index
    %c0_82 = arith.constant 0 : index
    %129 = vector.load %arg11[%c0_81, %c0_82] : memref<1x16xf32, #tpu.memory_space<vmem>>, vector<1x16xf32>
    %130 = vector.broadcast %129 : vector<1x16xf32> to vector<16x16xf32>
    %131 = arith.addf %128, %130 : vector<16x16xf32>
    %c0_83 = arith.constant 0 : index
    %c0_84 = arith.constant 0 : index
    %132 = vector.load %arg12[%c0_83, %c0_84] : memref<16x16xf32, #tpu.memory_space<vmem>>, vector<16x16xf32>
    %cst_85 = arith.constant dense<0.000000e+00> : vector<16x16xf32>
    %133 = tpu.matmul %108, %132, %cst_85 {dimension_numbers = #tpu.dot_dimension_numbers<[1], [0], [0], [1], [0, 0, 1, 1], [], []>} : vector<16x16xf32>, vector<16x16xf32>, vector<16x16xf32> -> vector<16x16xf32>
    %c0_86 = arith.constant 0 : index
    %c0_87 = arith.constant 0 : index
    %134 = vector.load %arg13[%c0_86, %c0_87] : memref<1x16xf32, #tpu.memory_space<vmem>>, vector<1x16xf32>
    %135 = vector.broadcast %134 : vector<1x16xf32> to vector<16x16xf32>
    %136 = arith.addf %133, %135 : vector<16x16xf32>
    %137 = arith.addf %131, %136 : vector<16x16xf32>
    %138 = math.tanh %137 : vector<16x16xf32>
    %cst_88 = arith.constant 0.000000e+00 : f32
    %139 = vector.broadcast %cst_88 : f32 to vector<2x16xf32>
    %140 = tpu.concatenate %139, %96, %139 in 0 : vector<2x16xf32>, vector<16x16xf32>, vector<2x16xf32> -> vector<20x16xf32>
    %141 = vector.extract_strided_slice %140 {offsets = [0, 0], sizes = [16, 16], strides = [1, 1]} : vector<20x16xf32> to vector<16x16xf32>
    %142 = vector.extract_strided_slice %140 {offsets = [1, 0], sizes = [16, 16], strides = [1, 1]} : vector<20x16xf32> to vector<16x16xf32>
    %143 = vector.extract_strided_slice %140 {offsets = [2, 0], sizes = [16, 16], strides = [1, 1]} : vector<20x16xf32> to vector<16x16xf32>
    %144 = vector.extract_strided_slice %140 {offsets = [3, 0], sizes = [16, 16], strides = [1, 1]} : vector<20x16xf32> to vector<16x16xf32>
    %145 = vector.extract_strided_slice %140 {offsets = [4, 0], sizes = [16, 16], strides = [1, 1]} : vector<20x16xf32> to vector<16x16xf32>
    %146 = tpu.concatenate %141, %142, %143, %144, %145 in 1 : vector<16x16xf32>, vector<16x16xf32>, vector<16x16xf32>, vector<16x16xf32>, vector<16x16xf32> -> vector<16x80xf32>
    %c0_89 = arith.constant 0 : index
    %c0_90 = arith.constant 0 : index
    %147 = vector.load %arg14[%c0_89, %c0_90] : memref<80x16xf32, #tpu.memory_space<vmem>>, vector<80x16xf32>
    %cst_91 = arith.constant dense<0.000000e+00> : vector<16x16xf32>
    %148 = tpu.matmul %146, %147, %cst_91 {dimension_numbers = #tpu.dot_dimension_numbers<[1], [0], [0], [1], [0, 0, 1, 1], [], []>} : vector<16x80xf32>, vector<80x16xf32>, vector<16x16xf32> -> vector<16x16xf32>
    %c0_92 = arith.constant 0 : index
    %c0_93 = arith.constant 0 : index
    %149 = vector.load %arg15[%c0_92, %c0_93] : memref<1x16xf32, #tpu.memory_space<vmem>>, vector<1x16xf32>
    %150 = vector.broadcast %149 : vector<1x16xf32> to vector<16x16xf32>
    %151 = arith.addf %148, %150 : vector<16x16xf32>
    %152 = math.tanh %151 : vector<16x16xf32>
    %cst_94 = arith.constant 0.000000e+00 : f32
    %153 = vector.broadcast %cst_94 : f32 to vector<2x16xf32>
    %154 = tpu.concatenate %153, %152, %153 in 0 : vector<2x16xf32>, vector<16x16xf32>, vector<2x16xf32> -> vector<20x16xf32>
    %155 = vector.extract_strided_slice %154 {offsets = [0, 0], sizes = [16, 16], strides = [1, 1]} : vector<20x16xf32> to vector<16x16xf32>
    %156 = vector.extract_strided_slice %154 {offsets = [1, 0], sizes = [16, 16], strides = [1, 1]} : vector<20x16xf32> to vector<16x16xf32>
    %157 = vector.extract_strided_slice %154 {offsets = [2, 0], sizes = [16, 16], strides = [1, 1]} : vector<20x16xf32> to vector<16x16xf32>
    %158 = vector.extract_strided_slice %154 {offsets = [3, 0], sizes = [16, 16], strides = [1, 1]} : vector<20x16xf32> to vector<16x16xf32>
    %159 = vector.extract_strided_slice %154 {offsets = [4, 0], sizes = [16, 16], strides = [1, 1]} : vector<20x16xf32> to vector<16x16xf32>
    %160 = tpu.concatenate %155, %156, %157, %158, %159 in 1 : vector<16x16xf32>, vector<16x16xf32>, vector<16x16xf32>, vector<16x16xf32>, vector<16x16xf32> -> vector<16x80xf32>
    %c0_95 = arith.constant 0 : index
    %c0_96 = arith.constant 0 : index
    %161 = vector.load %arg16[%c0_95, %c0_96] : memref<80x16xf32, #tpu.memory_space<vmem>>, vector<80x16xf32>
    %cst_97 = arith.constant dense<0.000000e+00> : vector<16x16xf32>
    %162 = tpu.matmul %160, %161, %cst_97 {dimension_numbers = #tpu.dot_dimension_numbers<[1], [0], [0], [1], [0, 0, 1, 1], [], []>} : vector<16x80xf32>, vector<80x16xf32>, vector<16x16xf32> -> vector<16x16xf32>
    %c0_98 = arith.constant 0 : index
    %c0_99 = arith.constant 0 : index
    %163 = vector.load %arg17[%c0_98, %c0_99] : memref<1x16xf32, #tpu.memory_space<vmem>>, vector<1x16xf32>
    %164 = vector.broadcast %163 : vector<1x16xf32> to vector<16x16xf32>
    %165 = arith.addf %162, %164 : vector<16x16xf32>
    %166 = math.tanh %165 : vector<16x16xf32>
    %cst_100 = arith.constant 0.000000e+00 : f32
    %167 = vector.broadcast %cst_100 : f32 to vector<2x16xf32>
    %168 = tpu.concatenate %167, %166, %167 in 0 : vector<2x16xf32>, vector<16x16xf32>, vector<2x16xf32> -> vector<20x16xf32>
    %169 = vector.extract_strided_slice %168 {offsets = [0, 0], sizes = [16, 16], strides = [1, 1]} : vector<20x16xf32> to vector<16x16xf32>
    %170 = vector.extract_strided_slice %168 {offsets = [1, 0], sizes = [16, 16], strides = [1, 1]} : vector<20x16xf32> to vector<16x16xf32>
    %171 = vector.extract_strided_slice %168 {offsets = [2, 0], sizes = [16, 16], strides = [1, 1]} : vector<20x16xf32> to vector<16x16xf32>
    %172 = vector.extract_strided_slice %168 {offsets = [3, 0], sizes = [16, 16], strides = [1, 1]} : vector<20x16xf32> to vector<16x16xf32>
    %173 = vector.extract_strided_slice %168 {offsets = [4, 0], sizes = [16, 16], strides = [1, 1]} : vector<20x16xf32> to vector<16x16xf32>
    %174 = tpu.concatenate %169, %170, %171, %172, %173 in 1 : vector<16x16xf32>, vector<16x16xf32>, vector<16x16xf32>, vector<16x16xf32>, vector<16x16xf32> -> vector<16x80xf32>
    %c0_101 = arith.constant 0 : index
    %c0_102 = arith.constant 0 : index
    %175 = vector.load %arg18[%c0_101, %c0_102] : memref<80x16xf32, #tpu.memory_space<vmem>>, vector<80x16xf32>
    %cst_103 = arith.constant dense<0.000000e+00> : vector<16x16xf32>
    %176 = tpu.matmul %174, %175, %cst_103 {dimension_numbers = #tpu.dot_dimension_numbers<[1], [0], [0], [1], [0, 0, 1, 1], [], []>} : vector<16x80xf32>, vector<80x16xf32>, vector<16x16xf32> -> vector<16x16xf32>
    %c0_104 = arith.constant 0 : index
    %c0_105 = arith.constant 0 : index
    %177 = vector.load %arg19[%c0_104, %c0_105] : memref<1x16xf32, #tpu.memory_space<vmem>>, vector<1x16xf32>
    %178 = vector.broadcast %177 : vector<1x16xf32> to vector<16x16xf32>
    %179 = arith.addf %176, %178 : vector<16x16xf32>
    %c0_106 = arith.constant 0 : index
    %c0_107 = arith.constant 0 : index
    %180 = vector.load %arg20[%c0_106, %c0_107] : memref<16x16xf32, #tpu.memory_space<vmem>>, vector<16x16xf32>
    %cst_108 = arith.constant dense<0.000000e+00> : vector<16x16xf32>
    %181 = tpu.matmul %152, %180, %cst_108 {dimension_numbers = #tpu.dot_dimension_numbers<[1], [0], [0], [1], [0, 0, 1, 1], [], []>} : vector<16x16xf32>, vector<16x16xf32>, vector<16x16xf32> -> vector<16x16xf32>
    %c0_109 = arith.constant 0 : index
    %c0_110 = arith.constant 0 : index
    %182 = vector.load %arg21[%c0_109, %c0_110] : memref<1x16xf32, #tpu.memory_space<vmem>>, vector<1x16xf32>
    %183 = vector.broadcast %182 : vector<1x16xf32> to vector<16x16xf32>
    %184 = arith.addf %181, %183 : vector<16x16xf32>
    %185 = arith.addf %179, %184 : vector<16x16xf32>
    %186 = math.tanh %185 : vector<16x16xf32>
    %187 = tpu.concatenate %138, %186 in 1 : vector<16x16xf32>, vector<16x16xf32> -> vector<16x32xf32>
    %c0_111 = arith.constant 0 : index
    %c0_112 = arith.constant 0 : index
    %188 = vector.load %arg3[%c0_111, %c0_112] : memref<8x32xf32, #tpu.memory_space<vmem>>, vector<8x32xf32>
    %cst_113 = arith.constant dense<0.000000e+00> : vector<8x16xf32>
    %189 = tpu.matmul %188, %187, %cst_113 {dimension_numbers = #tpu.dot_dimension_numbers<[1], [1], [0], [0], [0, 0, 1, 0], [], []>} : vector<8x32xf32>, vector<16x32xf32>, vector<8x16xf32> -> vector<8x16xf32>
    %cst_114 = arith.constant dense<0xFF800000> : vector<8xf32>
    %190 = vector.multi_reduction <maximumf>, %189, %cst_114 [1] : vector<8x16xf32> to vector<8xf32>
    %191 = vector.shape_cast %190 : vector<8xf32> to vector<8x1xf32>
    %192 = vector.broadcast %191 : vector<8x1xf32> to vector<8x16xf32>
    %193 = arith.subf %189, %192 : vector<8x16xf32>
    %194 = math.exp %193 : vector<8x16xf32>
    %cst_115 = arith.constant dense<0.000000e+00> : vector<8xf32>
    %195 = vector.multi_reduction <add>, %194, %cst_115 [1] : vector<8x16xf32> to vector<8xf32>
    %196 = vector.shape_cast %195 : vector<8xf32> to vector<8x1xf32>
    %197 = tpu.reciprocal %196 {approx = true} : vector<8x1xf32> -> vector<8x1xf32>
    %198 = vector.broadcast %197 : vector<8x1xf32> to vector<8x16xf32>
    %199 = arith.mulf %194, %198 : vector<8x16xf32>
    %cst_116 = arith.constant dense<0.000000e+00> : vector<8x32xf32>
    %200 = tpu.matmul %199, %187, %cst_116 {dimension_numbers = #tpu.dot_dimension_numbers<[1], [0], [0], [1], [0, 0, 1, 1], [], []>} : vector<8x16xf32>, vector<16x32xf32>, vector<8x32xf32> -> vector<8x32xf32>
    %c0_117 = arith.constant 0 : index
    %c0_118 = arith.constant 0 : index
    %201 = vector.load %arg4[%c0_117, %c0_118] : memref<8x32xf32, #tpu.memory_space<vmem>>, vector<8x32xf32>
    %202 = arith.mulf %201, %200 : vector<8x32xf32>
    %cst_119 = arith.constant dense<0.000000e+00> : vector<8xf32>
    %203 = vector.multi_reduction <add>, %202, %cst_119 [1] : vector<8x32xf32> to vector<8xf32>
    %c0_120 = arith.constant 0 : index
    %c0_121 = arith.constant 0 : index
    %204 = vector.load %arg5[%c0_120, %c0_121] : memref<1x8xf32, #tpu.memory_space<vmem>>, vector<1x8xf32>
    %205 = vector.shape_cast %203 : vector<8xf32> to vector<1x8xf32>
    %206 = arith.addf %205, %204 : vector<1x8xf32>
    %207 = vector.shape_cast %206 : vector<1x8xf32> to vector<1x1x8xf32>
    %c0_122 = arith.constant 0 : index
    %c0_123 = arith.constant 0 : index
    %c0_124 = arith.constant 0 : index
    %208 = vector.load %arg22[%c0_122, %c0_123, %c0_124] : memref<1x1x8xf32, #tpu.memory_space<vmem>>, vector<1x1x8xf32>
    tpu.vector_store %arg22[%c0_122, %c0_123, %c0_124], %207 {strides = array<i32>} : memref<1x1x8xf32, #tpu.memory_space<vmem>>, vector<1x1x8xf32>,
    return
  }
  func.func @transform_0(%arg0: i32, %arg1: memref<2x16xi32, #tpu.memory_space<smem>>) -> (i32, i32, i32) {
    %c0_i32 = arith.constant 0 : i32
    %c0_i32_0 = arith.constant 0 : i32
    %c0_i32_1 = arith.constant 0 : i32
    %c0_i32_2 = arith.constant 0 : i32
    return %c0_i32, %c0_i32_0, %c0_i32_1 : i32, i32, i32
  }
  func.func @transform_1(%arg0: i32, %arg1: memref<2x16xi32, #tpu.memory_space<smem>>) -> (i32, i32) {
    %c0_i32 = arith.constant 0 : i32
    %c0_i32_0 = arith.constant 0 : i32
    %c0_i32_1 = arith.constant 0 : i32
    return %c0_i32, %c0_i32_0 : i32, i32
  }
  func.func @transform_2(%arg0: i32, %arg1: memref<2x16xi32, #tpu.memory_space<smem>>) -> (i32, i32) {
    %c0_i32 = arith.constant 0 : i32
    %c0_i32_0 = arith.constant 0 : i32
    %c0_i32_1 = arith.constant 0 : i32
    return %c0_i32, %c0_i32_0 : i32, i32
  }
  func.func @transform_3(%arg0: i32, %arg1: memref<2x16xi32, #tpu.memory_space<smem>>) -> (i32, i32) {
    %c0_i32 = arith.constant 0 : i32
    %c0_i32_0 = arith.constant 0 : i32
    %c0_i32_1 = arith.constant 0 : i32
    return %c0_i32, %c0_i32_0 : i32, i32
  }
  func.func @transform_4(%arg0: i32, %arg1: memref<2x16xi32, #tpu.memory_space<smem>>) -> (i32, i32) {
    %c0_i32 = arith.constant 0 : i32
    %c0_i32_0 = arith.constant 0 : i32
    %c0_i32_1 = arith.constant 0 : i32
    return %c0_i32, %c0_i32_0 : i32, i32
  }
  func.func @transform_5(%arg0: i32, %arg1: memref<2x16xi32, #tpu.memory_space<smem>>) -> (i32, i32) {
    %c0_i32 = arith.constant 0 : i32
    %c0_i32_0 = arith.constant 0 : i32
    %c0_i32_1 = arith.constant 0 : i32
    return %c0_i32, %c0_i32_0 : i32, i32
  }
  func.func @transform_6(%arg0: i32, %arg1: memref<2x16xi32, #tpu.memory_space<smem>>) -> (i32, i32) {
    %c0_i32 = arith.constant 0 : i32
    %c0_i32_0 = arith.constant 0 : i32
    %c0_i32_1 = arith.constant 0 : i32
    return %c0_i32, %c0_i32_0 : i32, i32
  }
  func.func @transform_7(%arg0: i32, %arg1: memref<2x16xi32, #tpu.memory_space<smem>>) -> (i32, i32) {
    %c0_i32 = arith.constant 0 : i32
    %c0_i32_0 = arith.constant 0 : i32
    %c0_i32_1 = arith.constant 0 : i32
    return %c0_i32, %c0_i32_0 : i32, i32
  }
  func.func @transform_8(%arg0: i32, %arg1: memref<2x16xi32, #tpu.memory_space<smem>>) -> (i32, i32) {
    %c0_i32 = arith.constant 0 : i32
    %c0_i32_0 = arith.constant 0 : i32
    %c0_i32_1 = arith.constant 0 : i32
    return %c0_i32, %c0_i32_0 : i32, i32
  }
  func.func @transform_9(%arg0: i32, %arg1: memref<2x16xi32, #tpu.memory_space<smem>>) -> (i32, i32) {
    %c0_i32 = arith.constant 0 : i32
    %c0_i32_0 = arith.constant 0 : i32
    %c0_i32_1 = arith.constant 0 : i32
    return %c0_i32, %c0_i32_0 : i32, i32
  }
  func.func @transform_10(%arg0: i32, %arg1: memref<2x16xi32, #tpu.memory_space<smem>>) -> (i32, i32) {
    %c0_i32 = arith.constant 0 : i32
    %c0_i32_0 = arith.constant 0 : i32
    %c0_i32_1 = arith.constant 0 : i32
    return %c0_i32, %c0_i32_0 : i32, i32
  }
  func.func @transform_11(%arg0: i32, %arg1: memref<2x16xi32, #tpu.memory_space<smem>>) -> (i32, i32) {
    %c0_i32 = arith.constant 0 : i32
    %c0_i32_0 = arith.constant 0 : i32
    %c0_i32_1 = arith.constant 0 : i32
    return %c0_i32, %c0_i32_0 : i32, i32
  }
  func.func @transform_12(%arg0: i32, %arg1: memref<2x16xi32, #tpu.memory_space<smem>>) -> (i32, i32) {
    %c0_i32 = arith.constant 0 : i32
    %c0_i32_0 = arith.constant 0 : i32
    %c0_i32_1 = arith.constant 0 : i32
    return %c0_i32, %c0_i32_0 : i32, i32
  }
  func.func @transform_13(%arg0: i32, %arg1: memref<2x16xi32, #tpu.memory_space<smem>>) -> (i32, i32) {
    %c0_i32 = arith.constant 0 : i32
    %c0_i32_0 = arith.constant 0 : i32
    %c0_i32_1 = arith.constant 0 : i32
    return %c0_i32, %c0_i32_0 : i32, i32
  }
  func.func @transform_14(%arg0: i32, %arg1: memref<2x16xi32, #tpu.memory_space<smem>>) -> (i32, i32) {
    %c0_i32 = arith.constant 0 : i32
    %c0_i32_0 = arith.constant 0 : i32
    %c0_i32_1 = arith.constant 0 : i32
    return %c0_i32, %c0_i32_0 : i32, i32
  }
  func.func @transform_15(%arg0: i32, %arg1: memref<2x16xi32, #tpu.memory_space<smem>>) -> (i32, i32) {
    %c0_i32 = arith.constant 0 : i32
    %c0_i32_0 = arith.constant 0 : i32
    %c0_i32_1 = arith.constant 0 : i32
    return %c0_i32, %c0_i32_0 : i32, i32
  }
  func.func @transform_16(%arg0: i32, %arg1: memref<2x16xi32, #tpu.memory_space<smem>>) -> (i32, i32) {
    %c0_i32 = arith.constant 0 : i32
    %c0_i32_0 = arith.constant 0 : i32
    %c0_i32_1 = arith.constant 0 : i32
    return %c0_i32, %c0_i32_0 : i32, i32
  }
  func.func @transform_17(%arg0: i32, %arg1: memref<2x16xi32, #tpu.memory_space<smem>>) -> (i32, i32) {
    %c0_i32 = arith.constant 0 : i32
    %c0_i32_0 = arith.constant 0 : i32
    %c0_i32_1 = arith.constant 0 : i32
    return %c0_i32, %c0_i32_0 : i32, i32
  }
  func.func @transform_18(%arg0: i32, %arg1: memref<2x16xi32, #tpu.memory_space<smem>>) -> (i32, i32) {
    %c0_i32 = arith.constant 0 : i32
    %c0_i32_0 = arith.constant 0 : i32
    %c0_i32_1 = arith.constant 0 : i32
    return %c0_i32, %c0_i32_0 : i32, i32
  }
  func.func @transform_19(%arg0: i32, %arg1: memref<2x16xi32, #tpu.memory_space<smem>>) -> (i32, i32) {
    %c0_i32 = arith.constant 0 : i32
    %c0_i32_0 = arith.constant 0 : i32
    %c0_i32_1 = arith.constant 0 : i32
    return %c0_i32, %c0_i32_0 : i32, i32
  }
  func.func @transform_20(%arg0: i32, %arg1: memref<2x16xi32, #tpu.memory_space<smem>>) -> (i32, i32, i32) {
    %c0_i32 = arith.constant 0 : i32
    %c0_i32_0 = arith.constant 0 : i32
    %c0_i32_1 = arith.constant 0 : i32
    return %arg0, %c0_i32, %c0_i32_0 : i32, i32, i32
  }
}

</mosaic_0001>

<llo_original>
// kernel: multirescnn_pallas.1
$region0: #{multirescnn_pallas.1}
  #allocation0 [shape = 'u32[]', space=smem, size = 0x4, offset = 0x4, fixed_abs, tag = 'smem constant byte address 0x4 - core index']
  #allocation1 [shape = 'u32[144,128]{1,0:T(1,128)}', space=vmem, size = 0x12000, scoped, tag = 'internal scratch']
  #allocation2 [shape = 'f32[16,16]{1,0:T(8,128)}', space=vmem, size = 0x2000, scoped, tag = 'scratch operand']
  #allocation3 [shape = 's32[1]{0}', space=sflag, size = 0x4, scoped, tag = 'scoped memory for multirescnn_pallas.1']
  #allocation4 [shape = 'u8[1024]{0}', space=smem, size = 0x400, scoped, tag = 'prefetched SMEM operand 0']
  %s0 = inlined_call_operand.vmem [shape: s32[2,16], index: 0, kind: input, shape index: {}]
  %s1 = inlined_call_operand.vmem [shape: f32[50,1,16], index: 1, kind: input, shape index: {}]
  %s2 = inlined_call_operand.vmem [shape: f32[8,32], index: 2, kind: input, shape index: {}]
  %s3 = inlined_call_operand.vmem [shape: f32[8,32], index: 3, kind: input, shape index: {}]
  %s4 = inlined_call_operand.vmem [shape: f32[1,8], index: 4, kind: input, shape index: {}]
  %s5 = inlined_call_operand.vmem [shape: f32[48,16], index: 5, kind: input, shape index: {}]
  %s6 = inlined_call_operand.vmem [shape: f32[1,16], index: 6, kind: input, shape index: {}]
  %s7 = inlined_call_operand.vmem [shape: f32[48,16], index: 7, kind: input, shape index: {}]
  %s8 = inlined_call_operand.vmem [shape: f32[1,16], index: 8, kind: input, shape index: {}]
  %s9 = inlined_call_operand.vmem [shape: f32[48,16], index: 9, kind: input, shape index: {}]
  %s10 = inlined_call_operand.vmem [shape: f32[1,16], index: 10, kind: input, shape index: {}]
  %s11 = inlined_call_operand.vmem [shape: f32[16,16], index: 11, kind: input, shape index: {}]
  %s12 = inlined_call_operand.vmem [shape: f32[1,16], index: 12, kind: input, shape index: {}]
  %s13 = inlined_call_operand.vmem [shape: f32[80,16], index: 13, kind: input, shape index: {}]
  %s14 = inlined_call_operand.vmem [shape: f32[1,16], index: 14, kind: input, shape index: {}]
  %s15 = inlined_call_operand.vmem [shape: f32[80,16], index: 15, kind: input, shape index: {}]
  %s16 = inlined_call_operand.vmem [shape: f32[1,16], index: 16, kind: input, shape index: {}]
  %s17 = inlined_call_operand.vmem [shape: f32[80,16], index: 17, kind: input, shape index: {}]
  %s18 = inlined_call_operand.vmem [shape: f32[1,16], index: 18, kind: input, shape index: {}]
  %s19 = inlined_call_operand.vmem [shape: f32[16,16], index: 19, kind: input, shape index: {}]
  %s20 = inlined_call_operand.vmem [shape: f32[1,16], index: 20, kind: input, shape index: {}]
  %s21 = inlined_call_operand.hbm [shape: f32[2,1,8], index: 21, kind: output, shape index: {}]
  %s22 = sld [smem:[#allocation0]]
  $region113: #{multirescnn_pallas.1} parent=0
    _
  %s24 = ssub.s32 1, %s22
  %s25 = scalar_select 0, %s24, %s22
  %s26 = sshll.u32 %s0, 4
  %s27 = int_to_ptr.vmem [resolvable:$true] %s26
  %29 = dma.vmem_to_smem %s27, 32, [#allocation4], [#allocation3]
  %30 = dma.done [#allocation3], 32
  %31 = sfence
  $region1: #{multirescnn_pallas.1} parent=0
    #allocation5 [shape = 'u8[1024]{0}', space=vmem, size = 0x400, scoped, tag = 'output window, operand 0']
    #allocation6 [shape = 's32[2]{0}', space=sflag, size = 0x8, scoped, tag = 'scoped memory for multirescnn_pallas.1']
    %32 = vsyncpa [#allocation6], 0
    %s33 = scalar_lea.sflag [#allocation6], 1
    %34 = vsyncpa %s33, 0
    loop: start=0, step=1, limit=4
    $region2: #{multirescnn_pallas.1} parent=1 // loop_pre_header
      _
    $region3: #{multirescnn_pallas.1} parent=1 // loop_header
      %s36 = sphi 0, %s40
      %p37 = scmp.ge.s32.totalorder %s36, 4
      %s44 = sphi 0, %s44
      %s46 = sphi 0, %s44
      %s47 = sphi 0, %s46
      %s61 = sphi 0, %s47
      %s65 = sphi 0, %s65
      %s67 = sphi 0, %s65
      %s68 = sphi 0, %s67
      %s82 = sphi 0, %s68
      %s86 = sphi 0, %s86
      %s88 = sphi 0, %s86
      %s89 = sphi 0, %s88
      %s103 = sphi 0, %s89
      %s107 = sphi 0, %s107
      %s109 = sphi 0, %s107
      %s110 = sphi 0, %s109
      %s124 = sphi 0, %s110
      %s128 = sphi 0, %s128
      %s130 = sphi 0, %s128
      %s131 = sphi 0, %s130
      %s145 = sphi 0, %s131
      %s149 = sphi 0, %s149
      %s151 = sphi 0, %s149
      %s152 = sphi 0, %s151
      %s166 = sphi 0, %s152
      %s170 = sphi 0, %s170
      %s172 = sphi 0, %s170
      %s173 = sphi 0, %s172
      %s187 = sphi 0, %s173
      %s191 = sphi 0, %s191
      %s193 = sphi 0, %s191
      %s194 = sphi 0, %s193
      %s208 = sphi 0, %s194
      %s212 = sphi 0, %s212
      %s214 = sphi 0, %s212
      %s215 = sphi 0, %s214
      %s229 = sphi 0, %s215
      %s233 = sphi 0, %s233
      %s235 = sphi 0, %s233
      %s236 = sphi 0, %s235
      %s250 = sphi 0, %s236
      %s254 = sphi 0, %s254
      %s256 = sphi 0, %s254
      %s257 = sphi 0, %s256
      %s271 = sphi 0, %s257
      %s275 = sphi 0, %s275
      %s277 = sphi 0, %s275
      %s278 = sphi 0, %s277
      %s292 = sphi 0, %s278
      %s296 = sphi 0, %s296
      %s298 = sphi 0, %s296
      %s299 = sphi 0, %s298
      %s313 = sphi 0, %s299
      %s317 = sphi 0, %s317
      %s319 = sphi 0, %s317
      %s320 = sphi 0, %s319
      %s334 = sphi 0, %s320
      %s338 = sphi 0, %s338
      %s340 = sphi 0, %s338
      %s341 = sphi 0, %s340
      %s355 = sphi 0, %s341
      %s359 = sphi 0, %s359
      %s361 = sphi 0, %s359
      %s362 = sphi 0, %s361
      %s376 = sphi 0, %s362
      %s380 = sphi 0, %s380
      %s382 = sphi 0, %s380
      %s383 = sphi 0, %s382
      %s397 = sphi 0, %s383
      %s401 = sphi 0, %s401
      %s403 = sphi 0, %s401
      %s404 = sphi 0, %s403
      %s418 = sphi 0, %s404
      %s422 = sphi 0, %s422
      %s424 = sphi 0, %s422
      %s425 = sphi 0, %s424
      %s439 = sphi 0, %s425
      %s443 = sphi 0, %s443
      %s445 = sphi 0, %s443
      %s446 = sphi 0, %s445
      %s460 = sphi 0, %s446
      %s466 = sphi 0, %s468
      %s469 = sphi 0, %s466
      %s470 = sphi 0, %s469
      %s486 = sphi 0, %s470
    $region4: #{multirescnn_pallas.1} parent=1 // loop_header_branch
      %39 = sbr.rel (%p37) target = $region8
    $region5: #{multirescnn_pallas.1} parent=1 // loop_body
      %s41 = ssub.s32 %s36, 1
      %s42 = ssub.s32 %s36, 2
      %s43 = sadd.s32 %s36, 1
      %s45 = sadd.s32 %s44, 1
      %p48 = scmp.eq.s32.totalorder %s36, 1
      %p49 = scmp.ne.s32.totalorder %s44, %s46
      %p50 = scmp.eq.s32.totalorder %s36, 0
      %p51 = por %p49, %p50
      %p52 = scmp.ne.s32.totalorder %s44, %s46
      %p53 = scmp.eq.s32.totalorder %s41, 1
      %p54 = por %p52, %p53
      %p55 = scmp.ne.s32.totalorder %s46, %s47
      %p56 = scmp.eq.s32.totalorder %s41, 0
      %p57 = por %p55, %p56
      %p58 = scmp.ne.s32.totalorder %s46, %s47
      %p59 = scmp.eq.s32.totalorder %s42, 1
      %p60 = por %p58, %p59
      %p62 = scmp.ne.s32.totalorder %s47, %s61
      %p63 = scmp.eq.s32.totalorder %s42, 0
      %p64 = por %p62, %p63
      %s66 = sadd.s32 %s65, 1
      %p69 = scmp.eq.s32.totalorder %s36, 1
      %p70 = scmp.ne.s32.totalorder %s65, %s67
      %p71 = scmp.eq.s32.totalorder %s36, 0
      %p72 = por %p70, %p71
      %p73 = scmp.ne.s32.totalorder %s65, %s67
      %p74 = scmp.eq.s32.totalorder %s41, 1
      %p75 = por %p73, %p74
      %p76 = scmp.ne.s32.totalorder %s67, %s68
      %p77 = scmp.eq.s32.totalorder %s41, 0
      %p78 = por %p76, %p77
      %p79 = scmp.ne.s32.totalorder %s67, %s68
      %p80 = scmp.eq.s32.totalorder %s42, 1
      %p81 = por %p79, %p80
      %p83 = scmp.ne.s32.totalorder %s68, %s82
      %p84 = scmp.eq.s32.totalorder %s42, 0
      %p85 = por %p83, %p84
      %s87 = sadd.s32 %s86, 1
      %p90 = scmp.eq.s32.totalorder %s36, 1
      %p91 = scmp.ne.s32.totalorder %s86, %s88
      %p92 = scmp.eq.s32.totalorder %s36, 0
      %p93 = por %p91, %p92
      %p94 = scmp.ne.s32.totalorder %s86, %s88
      %p95 = scmp.eq.s32.totalorder %s41, 1
      %p96 = por %p94, %p95
      %p97 = scmp.ne.s32.totalorder %s88, %s89
      %p98 = scmp.eq.s32.totalorder %s41, 0
      %p99 = por %p97, %p98
      %p100 = scmp.ne.s32.totalorder %s88, %s89
      %p101 = scmp.eq.s32.totalorder %s42, 1
      %p102 = por %p100, %p101
      %p104 = scmp.ne.s32.totalorder %s89, %s103
      %p105 = scmp.eq.s32.totalorder %s42, 0
      %p106 = por %p104, %p105
      %s108 = sadd.s32 %s107, 1
      %p111 = scmp.eq.s32.totalorder %s36, 1
      %p112 = scmp.ne.s32.totalorder %s107, %s109
      %p113 = scmp.eq.s32.totalorder %s36, 0
      %p114 = por %p112, %p113
      %p115 = scmp.ne.s32.totalorder %s107, %s109
      %p116 = scmp.eq.s32.totalorder %s41, 1
      %p117 = por %p115, %p116
      %p118 = scmp.ne.s32.totalorder %s109, %s110
      %p119 = scmp.eq.s32.totalorder %s41, 0
      %p120 = por %p118, %p119
      %p121 = scmp.ne.s32.totalorder %s109, %s110
      %p122 = scmp.eq.s32.totalorder %s42, 1
      %p123 = por %p121, %p122
      %p125 = scmp.ne.s32.totalorder %s110, %s124
      %p126 = scmp.eq.s32.totalorder %s42, 0
      %p127 = por %p125, %p126
      %s129 = sadd.s32 %s128, 1
      %p132 = scmp.eq.s32.totalorder %s36, 1
      %p133 = scmp.ne.s32.totalorder %s128, %s130
      %p134 = scmp.eq.s32.totalorder %s36, 0
      %p135 = por %p133, %p134
      %p136 = scmp.ne.s32.totalorder %s128, %s130
      %p137 = scmp.eq.s32.totalorder %s41, 1
      %p138 = por %p136, %p137
      %p139 = scmp.ne.s32.totalorder %s130, %s131
      %p140 = scmp.eq.s32.totalorder %s41, 0
      %p141 = por %p139, %p140
      %p142 = scmp.ne.s32.totalorder %s130, %s131
      %p143 = scmp.eq.s32.totalorder %s42, 1
      %p144 = por %p142, %p143
      %p146 = scmp.ne.s32.totalorder %s131, %s145
      %p147 = scmp.eq.s32.totalorder %s42, 0
      %p148 = por %p146, %p147
      %s150 = sadd.s32 %s149, 1
      %p153 = scmp.eq.s32.totalorder %s36, 1
      %p154 = scmp.ne.s32.totalorder %s149, %s151
      %p155 = scmp.eq.s32.totalorder %s36, 0
      %p156 = por %p154, %p155
      %p157 = scmp.ne.s32.totalorder %s149, %s151
      %p158 = scmp.eq.s32.totalorder %s41, 1
      %p159 = por %p157, %p158
      %p160 = scmp.ne.s32.totalorder %s151, %s152
      %p161 = scmp.eq.s32.totalorder %s41, 0
      %p162 = por %p160, %p161
      %p163 = scmp.ne.s32.totalorder %s151, %s152
      %p164 = scmp.eq.s32.totalorder %s42, 1
      %p165 = por %p163, %p164
      %p167 = scmp.ne.s32.totalorder %s152, %s166
      %p168 = scmp.eq.s32.totalorder %s42, 0
      %p169 = por %p167, %p168
      %s171 = sadd.s32 %s170, 1
      %p174 = scmp.eq.s32.totalorder %s36, 1
      %p175 = scmp.ne.s32.totalorder %s170, %s172
      %p176 = scmp.eq.s32.totalorder %s36, 0
      %p177 = por %p175, %p176
      %p178 = scmp.ne.s32.totalorder %s170, %s172
      %p179 = scmp.eq.s32.totalorder %s41, 1
      %p180 = por %p178, %p179
      %p181 = scmp.ne.s32.totalorder %s172, %s173
      %p182 = scmp.eq.s32.totalorder %s41, 0
      %p183 = por %p181, %p182
      %p184 = scmp.ne.s32.totalorder %s172, %s173
      %p185 = scmp.eq.s32.totalorder %s42, 1
      %p186 = por %p184, %p185
      %p188 = scmp.ne.s32.totalorder %s173, %s187
      %p189 = scmp.eq.s32.totalorder %s42, 0
      %p190 = por %p188, %p189
      %s192 = sadd.s32 %s191, 1
      %p195 = scmp.eq.s32.totalorder %s36, 1
      %p196 = scmp.ne.s32.totalorder %s191, %s193
      %p197 = scmp.eq.s32.totalorder %s36, 0
      %p198 = por %p196, %p197
      %p199 = scmp.ne.s32.totalorder %s191, %s193
      %p200 = scmp.eq.s32.totalorder %s41, 1
      %p201 = por %p199, %p200
      %p202 = scmp.ne.s32.totalorder %s193, %s194
      %p203 = scmp.eq.s32.totalorder %s41, 0
      %p204 = por %p202, %p203
      %p205 = scmp.ne.s32.totalorder %s193, %s194
      %p206 = scmp.eq.s32.totalorder %s42, 1
      %p207 = por %p205, %p206
      %p209 = scmp.ne.s32.totalorder %s194, %s208
      %p210 = scmp.eq.s32.totalorder %s42, 0
      %p211 = por %p209, %p210
      %s213 = sadd.s32 %s212, 1
      %p216 = scmp.eq.s32.totalorder %s36, 1
      %p217 = scmp.ne.s32.totalorder %s212, %s214
      %p218 = scmp.eq.s32.totalorder %s36, 0
      %p219 = por %p217, %p218
      %p220 = scmp.ne.s32.totalorder %s212, %s214
      %p221 = scmp.eq.s32.totalorder %s41, 1
      %p222 = por %p220, %p221
      %p223 = scmp.ne.s32.totalorder %s214, %s215
      %p224 = scmp.eq.s32.totalorder %s41, 0
      %p225 = por %p223, %p224
      %p226 = scmp.ne.s32.totalorder %s214, %s215
      %p227 = scmp.eq.s32.totalorder %s42, 1
      %p228 = por %p226, %p227
      %p230 = scmp.ne.s32.totalorder %s215, %s229
      %p231 = scmp.eq.s32.totalorder %s42, 0
      %p232 = por %p230, %p231
      %s234 = sadd.s32 %s233, 1
      %p237 = scmp.eq.s32.totalorder %s36, 1
      %p238 = scmp.ne.s32.totalorder %s233, %s235
      %p239 = scmp.eq.s32.totalorder %s36, 0
      %p240 = por %p238, %p239
      %p241 = scmp.ne.s32.totalorder %s233, %s235
      %p242 = scmp.eq.s32.totalorder %s41, 1
      %p243 = por %p241, %p242
      %p244 = scmp.ne.s32.totalorder %s235, %s236
      %p245 = scmp.eq.s32.totalorder %s41, 0
      %p246 = por %p244, %p245
      %p247 = scmp.ne.s32.totalorder %s235, %s236
      %p248 = scmp.eq.s32.totalorder %s42, 1
      %p249 = por %p247, %p248
      %p251 = scmp.ne.s32.totalorder %s236, %s250
      %p252 = scmp.eq.s32.totalorder %s42, 0
      %p253 = por %p251, %p252
      %s255 = sadd.s32 %s254, 1
      %p258 = scmp.eq.s32.totalorder %s36, 1
      %p259 = scmp.ne.s32.totalorder %s254, %s256
      %p260 = scmp.eq.s32.totalorder %s36, 0
      %p261 = por %p259, %p260
      %p262 = scmp.ne.s32.totalorder %s254, %s256
      %p263 = scmp.eq.s32.totalorder %s41, 1
      %p264 = por %p262, %p263
      %p265 = scmp.ne.s32.totalorder %s256, %s257
      %p266 = scmp.eq.s32.totalorder %s41, 0
      %p267 = por %p265, %p266
      %p268 = scmp.ne.s32.totalorder %s256, %s257
      %p269 = scmp.eq.s32.totalorder %s42, 1
      %p270 = por %p268, %p269
      %p272 = scmp.ne.s32.totalorder %s257, %s271
      %p273 = scmp.eq.s32.totalorder %s42, 0
      %p274 = por %p272, %p273
      %s276 = sadd.s32 %s275, 1
      %p279 = scmp.eq.s32.totalorder %s36, 1
      %p280 = scmp.ne.s32.totalorder %s275, %s277
      %p281 = scmp.eq.s32.totalorder %s36, 0
      %p282 = por %p280, %p281
      %p283 = scmp.ne.s32.totalorder %s275, %s277
      %p284 = scmp.eq.s32.totalorder %s41, 1
      %p285 = por %p283, %p284
      %p286 = scmp.ne.s32.totalorder %s277, %s278
      %p287 = scmp.eq.s32.totalorder %s41, 0
      %p288 = por %p286, %p287
      %p289 = scmp.ne.s32.totalorder %s277, %s278
      %p290 = scmp.eq.s32.totalorder %s42, 1
      %p291 = por %p289, %p290
      %p293 = scmp.ne.s32.totalorder %s278, %s292
      %p294 = scmp.eq.s32.totalorder %s42, 0
      %p295 = por %p293, %p294
      %s297 = sadd.s32 %s296, 1
      %p300 = scmp.eq.s32.totalorder %s36, 1
      %p301 = scmp.ne.s32.totalorder %s296, %s298
      %p302 = scmp.eq.s32.totalorder %s36, 0
      %p303 = por %p301, %p302
      %p304 = scmp.ne.s32.totalorder %s296, %s298
      %p305 = scmp.eq.s32.totalorder %s41, 1
      %p306 = por %p304, %p305
      %p307 = scmp.ne.s32.totalorder %s298, %s299
      %p308 = scmp.eq.s32.totalorder %s41, 0
      %p309 = por %p307, %p308
      %p310 = scmp.ne.s32.totalorder %s298, %s299
      %p311 = scmp.eq.s32.totalorder %s42, 1
      %p312 = por %p310, %p311
      %p314 = scmp.ne.s32.totalorder %s299, %s313
      %p315 = scmp.eq.s32.totalorder %s42, 0
      %p316 = por %p314, %p315
      %s318 = sadd.s32 %s317, 1
      %p321 = scmp.eq.s32.totalorder %s36, 1
      %p322 = scmp.ne.s32.totalorder %s317, %s319
      %p323 = scmp.eq.s32.totalorder %s36, 0
      %p324 = por %p322, %p323
      %p325 = scmp.ne.s32.totalorder %s317, %s319
      %p326 = scmp.eq.s32.totalorder %s41, 1
      %p327 = por %p325, %p326
      %p328 = scmp.ne.s32.totalorder %s319, %s320
      %p329 = scmp.eq.s32.totalorder %s41, 0
      %p330 = por %p328, %p329
      %p331 = scmp.ne.s32.totalorder %s319, %s320
      %p332 = scmp.eq.s32.totalorder %s42, 1
      %p333 = por %p331, %p332
      %p335 = scmp.ne.s32.totalorder %s320, %s334
      %p336 = scmp.eq.s32.totalorder %s42, 0
      %p337 = por %p335, %p336
      %s339 = sadd.s32 %s338, 1
      %p342 = scmp.eq.s32.totalorder %s36, 1
      %p343 = scmp.ne.s32.totalorder %s338, %s340
      %p344 = scmp.eq.s32.totalorder %s36, 0
      %p345 = por %p343, %p344
      %p346 = scmp.ne.s32.totalorder %s338, %s340
      %p347 = scmp.eq.s32.totalorder %s41, 1
      %p348 = por %p346, %p347
      %p349 = scmp.ne.s32.totalorder %s340, %s341
      %p350 = scmp.eq.s32.totalorder %s41, 0
      %p351 = por %p349, %p350
      %p352 = scmp.ne.s32.totalorder %s340, %s341
      %p353 = scmp.eq.s32.totalorder %s42, 1
      %p354 = por %p352, %p353
      %p356 = scmp.ne.s32.totalorder %s341, %s355
      %p357 = scmp.eq.s32.totalorder %s42, 0
      %p358 = por %p356, %p357
      %s360 = sadd.s32 %s359, 1
      %p363 = scmp.eq.s32.totalorder %s36, 1
      %p364 = scmp.ne.s32.totalorder %s359, %s361
      %p365 = scmp.eq.s32.totalorder %s36, 0
      %p366 = por %p364, %p365
      %p367 = scmp.ne.s32.totalorder %s359, %s361
      %p368 = scmp.eq.s32.totalorder %s41, 1
      %p369 = por %p367, %p368
      %p370 = scmp.ne.s32.totalorder %s361, %s362
      %p371 = scmp.eq.s32.totalorder %s41, 0
      %p372 = por %p370, %p371
      %p373 = scmp.ne.s32.totalorder %s361, %s362
      %p374 = scmp.eq.s32.totalorder %s42, 1
      %p375 = por %p373, %p374
      %p377 = scmp.ne.s32.totalorder %s362, %s376
      %p378 = scmp.eq.s32.totalorder %s42, 0
      %p379 = por %p377, %p378
      %s381 = sadd.s32 %s380, 1
      %p384 = scmp.eq.s32.totalorder %s36, 1
      %p385 = scmp.ne.s32.totalorder %s380, %s382
      %p386 = scmp.eq.s32.totalorder %s36, 0
      %p387 = por %p385, %p386
      %p388 = scmp.ne.s32.totalorder %s380, %s382
      %p389 = scmp.eq.s32.totalorder %s41, 1
      %p390 = por %p388, %p389
      %p391 = scmp.ne.s32.totalorder %s382, %s383
      %p392 = scmp.eq.s32.totalorder %s41, 0
      %p393 = por %p391, %p392
      %p394 = scmp.ne.s32.totalorder %s382, %s383
      %p395 = scmp.eq.s32.totalorder %s42, 1
      %p396 = por %p394, %p395
      %p398 = scmp.ne.s32.totalorder %s383, %s397
      %p399 = scmp.eq.s32.totalorder %s42, 0
      %p400 = por %p398, %p399
      %s402 = sadd.s32 %s401, 1
      %p405 = scmp.eq.s32.totalorder %s36, 1
      %p406 = scmp.ne.s32.totalorder %s401, %s403
      %p407 = scmp.eq.s32.totalorder %s36, 0
      %p408 = por %p406, %p407
      %p409 = scmp.ne.s32.totalorder %s401, %s403
      %p410 = scmp.eq.s32.totalorder %s41, 1
      %p411 = por %p409, %p410
      %p412 = scmp.ne.s32.totalorder %s403, %s404
      %p413 = scmp.eq.s32.totalorder %s41, 0
      %p414 = por %p412, %p413
      %p415 = scmp.ne.s32.totalorder %s403, %s404
      %p416 = scmp.eq.s32.totalorder %s42, 1
      %p417 = por %p415, %p416
      %p419 = scmp.ne.s32.totalorder %s404, %s418
      %p420 = scmp.eq.s32.totalorder %s42, 0
      %p421 = por %p419, %p420
      %s423 = sadd.s32 %s422, 1
      %p426 = scmp.eq.s32.totalorder %s36, 1
      %p427 = scmp.ne.s32.totalorder %s422, %s424
      %p428 = scmp.eq.s32.totalorder %s36, 0
      %p429 = por %p427, %p428
      %p430 = scmp.ne.s32.totalorder %s422, %s424
      %p431 = scmp.eq.s32.totalorder %s41, 1
      %p432 = por %p430, %p431
      %p433 = scmp.ne.s32.totalorder %s424, %s425
      %p434 = scmp.eq.s32.totalorder %s41, 0
      %p435 = por %p433, %p434
      %p436 = scmp.ne.s32.totalorder %s424, %s425
      %p437 = scmp.eq.s32.totalorder %s42, 1
      %p438 = por %p436, %p437
      %p440 = scmp.ne.s32.totalorder %s425, %s439
      %p441 = scmp.eq.s32.totalorder %s42, 0
      %p442 = por %p440, %p441
      %s444 = sadd.s32 %s443, 1
      %p447 = scmp.eq.s32.totalorder %s36, 1
      %p448 = scmp.ne.s32.totalorder %s443, %s445
      %p449 = scmp.eq.s32.totalorder %s36, 0
      %p450 = por %p448, %p449
      %p451 = scmp.ne.s32.totalorder %s443, %s445
      %p452 = scmp.eq.s32.totalorder %s41, 1
      %p453 = por %p451, %p452
      %p454 = scmp.ne.s32.totalorder %s445, %s446
      %p455 = scmp.eq.s32.totalorder %s41, 0
      %p456 = por %p454, %p455
      %p457 = scmp.ne.s32.totalorder %s445, %s446
      %p458 = scmp.eq.s32.totalorder %s42, 1
      %p459 = por %p457, %p458
      %p461 = scmp.ne.s32.totalorder %s446, %s460
      %p462 = scmp.eq.s32.totalorder %s42, 0
      %p463 = por %p461, %p462
      %s464 = ssub.s32 %s36, %s43
      %p465 = scmp.eq.s32.totalorder %s464, 0
      %s467 = sadd.s32 %s466, 1
      %s468 = scalar_select %p465, %s466, %s467
      %p471 = pneg %p465
      %p472 = scmp.eq.s32.totalorder %s36, 1
      %p473 = por %p471, %p472
      %p474 = scmp.ne.s32.totalorder %s466, %s469
      %p475 = scmp.eq.s32.totalorder %s36, 0
      %p476 = por %p474, %p475
      %p477 = scmp.ne.s32.totalorder %s466, %s469
      %p478 = scmp.eq.s32.totalorder %s41, 1
      %p479 = por %p477, %p478
      %p480 = scmp.ne.s32.totalorder %s469, %s470
      %p481 = scmp.eq.s32.totalorder %s41, 0
      %p482 = por %p480, %p481
      %p483 = scmp.ne.s32.totalorder %s469, %s470
      %p484 = scmp.eq.s32.totalorder %s42, 1
      %p485 = por %p483, %p484
      %p487 = scmp.ne.s32.totalorder %s470, %s486
      %p488 = scmp.eq.s32.totalorder %s42, 0
      %p489 = por %p487, %p488
      %p490 = scmp.le.s32.totalorder 1, %s36
      %p491 = scmp.lt.s32.totalorder %s36, 3
      %p492 = pnand %p490, %p491
      %p493 = pneg %p492
      // Predicated region
      $region9: #{multirescnn_pallas.1} parent=5 // pred_check
        _
      $region10: #{multirescnn_pallas.1} parent=5 // pred_check_branch
        %495 = sbr.rel (%p492) target = $region12
      $region11: #{multirescnn_pallas.1} parent=5 // pred_region
        %s496 = ssub.s32 %s36, 1
        // Predicated region
        $region13: #{multirescnn_pallas.1} parent=11 // pred_check
          %p497 = pneg %p57
        $region14: #{multirescnn_pallas.1} parent=11 // pred_check_branch
          %499 = sbr.rel (%p497) target = $region16
        $region15: #{multirescnn_pallas.1} parent=11 // pred_region
          _
        $region16: #{multirescnn_pallas.1} parent=11 // pred_fallthru
          _
        // Predicated region
        $region17: #{multirescnn_pallas.1} parent=11 // pred_check
          %p500 = pneg %p78
        $region18: #{multirescnn_pallas.1} parent=11 // pred_check_branch
          %502 = sbr.rel (%p500) target = $region20
        $region19: #{multirescnn_pallas.1} parent=11 // pred_region
          _
        $region20: #{multirescnn_pallas.1} parent=11 // pred_fallthru
          _
        // Predicated region
        $region21: #{multirescnn_pallas.1} parent=11 // pred_check
          %p503 = pneg %p99
        $region22: #{multirescnn_pallas.1} parent=11 // pred_check_branch
          %505 = sbr.rel (%p503) target = $region24
        $region23: #{multirescnn_pallas.1} parent=11 // pred_region
          _
        $region24: #{multirescnn_pallas.1} parent=11 // pred_fallthru
          _
        // Predicated region
        $region25: #{multirescnn_pallas.1} parent=11 // pred_check
          %p506 = pneg %p120
        $region26: #{multirescnn_pallas.1} parent=11 // pred_check_branch
          %508 = sbr.rel (%p506) target = $region28
        $region27: #{multirescnn_pallas.1} parent=11 // pred_region
          _
        $region28: #{multirescnn_pallas.1} parent=11 // pred_fallthru
          _
        // Predicated region
        $region29: #{multirescnn_pallas.1} parent=11 // pred_check
          %p509 = pneg %p141
        $region30: #{multirescnn_pallas.1} parent=11 // pred_check_branch
          %511 = sbr.rel (%p509) target = $region32
        $region31: #{multirescnn_pallas.1} parent=11 // pred_region
          _
        $region32: #{multirescnn_pallas.1} parent=11 // pred_fallthru
          _
        // Predicated region
        $region33: #{multirescnn_pallas.1} parent=11 // pred_check
          %p512 = pneg %p162
        $region34: #{multirescnn_pallas.1} parent=11 // pred_check_branch
          %514 = sbr.rel (%p512) target = $region36
        $region35: #{multirescnn_pallas.1} parent=11 // pred_region
          _
        $region36: #{multirescnn_pallas.1} parent=11 // pred_fallthru
          _
        // Predicated region
        $region37: #{multirescnn_pallas.1} parent=11 // pred_check
          %p515 = pneg %p183
        $region38: #{multirescnn_pallas.1} parent=11 // pred_check_branch
          %517 = sbr.rel (%p515) target = $region40
        $region39: #{multirescnn_pallas.1} parent=11 // pred_region
          _
        $region40: #{multirescnn_pallas.1} parent=11 // pred_fallthru
          _
        // Predicated region
        $region41: #{multirescnn_pallas.1} parent=11 // pred_check
          %p518 = pneg %p204
        $region42: #{multirescnn_pallas.1} parent=11 // pred_check_branch
          %520 = sbr.rel (%p518) target = $region44
        $region43: #{multirescnn_pallas.1} parent=11 // pred_region
          _
        $region44: #{multirescnn_pallas.1} parent=11 // pred_fallthru
          _
        // Predicated region
        $region45: #{multirescnn_pallas.1} parent=11 // pred_check
          %p521 = pneg %p225
        $region46: #{multirescnn_pallas.1} parent=11 // pred_check_branch
          %523 = sbr.rel (%p521) target = $region48
        $region47: #{multirescnn_pallas.1} parent=11 // pred_region
          _
        $region48: #{multirescnn_pallas.1} parent=11 // pred_fallthru
          _
        // Predicated region
        $region49: #{multirescnn_pallas.1} parent=11 // pred_check
          %p524 = pneg %p246
        $region50: #{multirescnn_pallas.1} parent=11 // pred_check_branch
          %526 = sbr.rel (%p524) target = $region52
        $region51: #{multirescnn_pallas.1} parent=11 // pred_region
          _
        $region52: #{multirescnn_pallas.1} parent=11 // pred_fallthru
          _
        // Predicated region
        $region53: #{multirescnn_pallas.1} parent=11 // pred_check
          %p527 = pneg %p267
        $region54: #{multirescnn_pallas.1} parent=11 // pred_check_branch
          %529 = sbr.rel (%p527) target = $region56
        $region55: #{multirescnn_pallas.1} parent=11 // pred_region
          _
        $region56: #{multirescnn_pallas.1} parent=11 // pred_fallthru
          _
        // Predicated region
        $region57: #{multirescnn_pallas.1} parent=11 // pred_check
          %p530 = pneg %p288
        $region58: #{multirescnn_pallas.1} parent=11 // pred_check_branch
          %532 = sbr.rel (%p530) target = $region60
        $region59: #{multirescnn_pallas.1} parent=11 // pred_region
          _
        $region60: #{multirescnn_pallas.1} parent=11 // pred_fallthru
          _
        // Predicated region
        $region61: #{multirescnn_pallas.1} parent=11 // pred_check
          %p533 = pneg %p309
        $region62: #{multirescnn_pallas.1} parent=11 // pred_check_branch
          %535 = sbr.rel (%p533) target = $region64
        $region63: #{multirescnn_pallas.1} parent=11 // pred_region
          _
        $region64: #{multirescnn_pallas.1} parent=11 // pred_fallthru
          _
        // Predicated region
        $region65: #{multirescnn_pallas.1} parent=11 // pred_check
          %p536 = pneg %p330
        $region66: #{multirescnn_pallas.1} parent=11 // pred_check_branch
          %538 = sbr.rel (%p536) target = $region68
        $region67: #{multirescnn_pallas.1} parent=11 // pred_region
          _
        $region68: #{multirescnn_pallas.1} parent=11 // pred_fallthru
          _
        // Predicated region
        $region69: #{multirescnn_pallas.1} parent=11 // pred_check
          %p539 = pneg %p351
        $region70: #{multirescnn_pallas.1} parent=11 // pred_check_branch
          %541 = sbr.rel (%p539) target = $region72
        $region71: #{multirescnn_pallas.1} parent=11 // pred_region
          _
        $region72: #{multirescnn_pallas.1} parent=11 // pred_fallthru
          _
        // Predicated region
        $region73: #{multirescnn_pallas.1} parent=11 // pred_check
          %p542 = pneg %p372
        $region74: #{multirescnn_pallas.1} parent=11 // pred_check_branch
          %544 = sbr.rel (%p542) target = $region76
        $region75: #{multirescnn_pallas.1} parent=11 // pred_region
          _
        $region76: #{multirescnn_pallas.1} parent=11 // pred_fallthru
          _
        // Predicated region
        $region77: #{multirescnn_pallas.1} parent=11 // pred_check
          %p545 = pneg %p393
        $region78: #{multirescnn_pallas.1} parent=11 // pred_check_branch
          %547 = sbr.rel (%p545) target = $region80
        $region79: #{multirescnn_pallas.1} parent=11 // pred_region
          _
        $region80: #{multirescnn_pallas.1} parent=11 // pred_fallthru
          _
        // Predicated region
        $region81: #{multirescnn_pallas.1} parent=11 // pred_check
          %p548 = pneg %p414
        $region82: #{multirescnn_pallas.1} parent=11 // pred_check_branch
          %550 = sbr.rel (%p548) target = $region84
        $region83: #{multirescnn_pallas.1} parent=11 // pred_region
          _
        $region84: #{multirescnn_pallas.1} parent=11 // pred_fallthru
          _
        // Predicated region
        $region85: #{multirescnn_pallas.1} parent=11 // pred_check
          %p551 = pneg %p435
        $region86: #{multirescnn_pallas.1} parent=11 // pred_check_branch
          %553 = sbr.rel (%p551) target = $region88
        $region87: #{multirescnn_pallas.1} parent=11 // pred_region
          _
        $region88: #{multirescnn_pallas.1} parent=11 // pred_fallthru
          _
        // Predicated region
        $region89: #{multirescnn_pallas.1} parent=11 // pred_check
          %p554 = pneg %p456
        $region90: #{multirescnn_pallas.1} parent=11 // pred_check_branch
          %556 = sbr.rel (%p554) target = $region92
        $region91: #{multirescnn_pallas.1} parent=11 // pred_region
          _
        $region92: #{multirescnn_pallas.1} parent=11 // pred_fallthru
          _
      $region12: #{multirescnn_pallas.1} parent=5 // pred_fallthru
        _
      %p557 = scmp.lt.s32.totalorder %s36, 2
      // Predicated region
      $region93: #{multirescnn_pallas.1} parent=5 // pred_check
        %p558 = pneg %p557
      $region94: #{multirescnn_pallas.1} parent=5 // pred_check_branch
        %560 = sbr.rel (%p558) target = $region96
      $region95: #{multirescnn_pallas.1} parent=5 // pred_region
        _
      $region96: #{multirescnn_pallas.1} parent=5 // pred_fallthru
        _
      %p561 = scmp.le.s32.totalorder 1, %s36
      %p562 = scmp.lt.s32.totalorder %s36, 3
      %p563 = pnand %p561, %p562
      %p564 = pneg %p563
      // Predicated region
      $region97: #{multirescnn_pallas.1} parent=5 // pred_check
        _
      $region98: #{multirescnn_pallas.1} parent=5 // pred_check_branch
        %566 = sbr.rel (%p563) target = $region100
      $region99: #{multirescnn_pallas.1} parent=5 // pred_region
        %s567 = ssub.s32 %s36, 1
        %p568 = pneg %p57
        %p569 = pneg %p54
        %p570 = pneg %p78
        %p571 = pneg %p75
        %p572 = pneg %p99
        %p573 = pneg %p96
        %p574 = pneg %p120
        %p575 = pneg %p117
        %p576 = pneg %p141
        %p577 = pneg %p138
        %p578 = pneg %p162
        %p579 = pneg %p159
        %p580 = pneg %p183
        %p581 = pneg %p180
        %p582 = pneg %p204
        %p583 = pneg %p201
        %p584 = pneg %p225
        %p585 = pneg %p222
        %p586 = pneg %p246
        %p587 = pneg %p243
        %p588 = pneg %p267
        %p589 = pneg %p264
        %p590 = pneg %p288
        %p591 = pneg %p285
        %p592 = pneg %p309
        %p593 = pneg %p306
        %p594 = pneg %p330
        %p595 = pneg %p327
        %p596 = pneg %p351
        %p597 = pneg %p348
        %p598 = pneg %p372
        %p599 = pneg %p369
        %p600 = pneg %p393
        %p601 = pneg %p390
        %p602 = pneg %p414
        %p603 = pneg %p411
        %p604 = pneg %p435
        %p605 = pneg %p432
        %p606 = pneg %p456
        %p607 = pneg %p453
        %p608 = pneg %p482
        %p609 = pneg %p479
        %s610 = sand.u32 %s469, 1
        %s611 = scalar_lea.sflag [#allocation6], %s610
        %s612 = sand.u32 %s469, 1
        %s613 = scalar_lea.vmem [#allocation5], %s612
        %s614 = smul.u32 %s41, 128
        %s615 = sld [smem:[#allocation4 + %s614]]
        %s616 = scalar_lea.vmem %s1, %s615
        %v617 = vld [vmem:[%s616] sm:$0x1]
        %vm618 = vcmask 122880
        %619 = vst.msk [vmem:[#allocation2] sm:$0x1] %vm618, %v617
        %s620 = sadd.s32 %s614, 1
        %s621 = sld [smem:[#allocation4 + %s620]]
        %s622 = scalar_lea.vmem %s1, %s621
        %v623 = vld [vmem:[%s622] sm:$0x1]
        %624 = vst.msk [vmem:[#allocation2 + $0x1] sm:$0x1] %vm618, %v623
        %s625 = sadd.s32 %s614, 2
        %s626 = sld [smem:[#allocation4 + %s625]]
        %s627 = scalar_lea.vmem %s1, %s626
        %v628 = vld [vmem:[%s627] sm:$0x1]
        %629 = vst.msk [vmem:[#allocation2 + $0x2] sm:$0x1] %vm618, %v628
        %s630 = sadd.s32 %s614, 3
        %s631 = sld [smem:[#allocation4 + %s630]]
        %s632 = scalar_lea.vmem %s1, %s631
        %v633 = vld [vmem:[%s632] sm:$0x1]
        %634 = vst.msk [vmem:[#allocation2 + $0x3] sm:$0x1] %vm618, %v633
        %s635 = sadd.s32 %s614, 4
        %s636 = sld [smem:[#allocation4 + %s635]]
        %s637 = scalar_lea.vmem %s1, %s636
        %v638 = vld [vmem:[%s637] sm:$0x1]
        %639 = vst.msk [vmem:[#allocation2 + $0x4] sm:$0x1] %vm618, %v638
        %s640 = sadd.s32 %s614, 5
        %s641 = sld [smem:[#allocation4 + %s640]]
        %s642 = scalar_lea.vmem %s1, %s641
        %v643 = vld [vmem:[%s642] sm:$0x1]
        %644 = vst.msk [vmem:[#allocation2 + $0x5] sm:$0x1] %vm618, %v643
        %s645 = sadd.s32 %s614, 6
        %s646 = sld [smem:[#allocation4 + %s645]]
        %s647 = scalar_lea.vmem %s1, %s646
        %v648 = vld [vmem:[%s647] sm:$0x1]
        %649 = vst.msk [vmem:[#allocation2 + $0x6] sm:$0x1] %vm618, %v648
        %s650 = sadd.s32 %s614, 7
        %s651 = sld [smem:[#allocation4 + %s650]]
        %s652 = scalar_lea.vmem %s1, %s651
        %v653 = vld [vmem:[%s652] sm:$0x1]
        %654 = vst.msk [vmem:[#allocation2 + $0x7] sm:$0x1] %vm618, %v653
        %s655 = sadd.s32 %s614, 8
        %s656 = sld [smem:[#allocation4 + %s655]]
        %s657 = scalar_lea.vmem %s1, %s656
        %v658 = vld [vmem:[%s657] sm:$0x1]
        %659 = vst.msk [vmem:[#allocation2 + $0x8] sm:$0x1] %vm618, %v658
        %s660 = sadd.s32 %s614, 9
        %s661 = sld [smem:[#allocation4 + %s660]]
        %s662 = scalar_lea.vmem %s1, %s661
        %v663 = vld [vmem:[%s662] sm:$0x1]
        %664 = vst.msk [vmem:[#allocation2 + $0x9] sm:$0x1] %vm618, %v663
        %s665 = sadd.s32 %s614, 10
        %s666 = sld [smem:[#allocation4 + %s665]]
        %s667 = scalar_lea.vmem %s1, %s666
        %v668 = vld [vmem:[%s667] sm:$0x1]
        %669 = vst.msk [vmem:[#allocation2 + $0xa] sm:$0x1] %vm618, %v668
        %s670 = sadd.s32 %s614, 11
        %s671 = sld [smem:[#allocation4 + %s670]]
        %s672 = scalar_lea.vmem %s1, %s671
        %v673 = vld [vmem:[%s672] sm:$0x1]
        %674 = vst.msk [vmem:[#allocation2 + $0xb] sm:$0x1] %vm618, %v673
        %s675 = sadd.s32 %s614, 12
        %s676 = sld [smem:[#allocation4 + %s675]]
        %s677 = scalar_lea.vmem %s1, %s676
        %v678 = vld [vmem:[%s677] sm:$0x1]
        %679 = vst.msk [vmem:[#allocation2 + $0xc] sm:$0x1] %vm618, %v678
        %s680 = sadd.s32 %s614, 13
        %s681 = sld [smem:[#allocation4 + %s680]]
        %s682 = scalar_lea.vmem %s1, %s681
        %v683 = vld [vmem:[%s682] sm:$0x1]
        %684 = vst.msk [vmem:[#allocation2 + $0xd] sm:$0x1] %vm618, %v683
        %s685 = sadd.s32 %s614, 14
        %s686 = sld [smem:[#allocation4 + %s685]]
        %s687 = scalar_lea.vmem %s1, %s686
        %v688 = vld [vmem:[%s687] sm:$0x1]
        %689 = vst.msk [vmem:[#allocation2 + $0xe] sm:$0x1] %vm618, %v688
        %s690 = sadd.s32 %s614, 15
        %s691 = sld [smem:[#allocation4 + %s690]]
        %s692 = scalar_lea.vmem %s1, %s691
        %v693 = vld [vmem:[%s692] sm:$0x1]
        %694 = vst.msk [vmem:[#allocation2 + $0xf] sm:$0x1] %vm618, %v693
        %v695 = vld [vmem:[#allocation2] sm:$0xff]
        %v696 = vld [vmem:[#allocation2 + $0x8] sm:$0xff]
        %vm699 = vcmask 1040384
        %v700 = vrot.slane %v695, 7
        %v701 = vrot.slane %v696, 7
        %v702 = vsel %vm699, %v700, %v701
        %v706 = vsel %vm699, 0.0, %v700
        %v707 = vsel %vm699, %v701, 0.0
        %vm710 = vcmask 1046528
        %v711 = vrot.slane %v706, 1
        %v712 = vrot.slane %v702, 1
        %v713 = vsel %vm710, %v711, %v712
        %v714 = vrot.slane %v707, 1
        %v715 = vsel %vm710, %v712, %v714
        %716 = vrot.lane.b32.xlu0 %v713, 16
        %v717 = vpop.permute.xlu0 %716
        %718 = vrot.lane.b32.xlu0 %v715, 16
        %v719 = vpop.permute.xlu0 %718
        %vm722 = vcmask 1045504
        %v723 = vrot.slane %v706, 2
        %v724 = vrot.slane %v702, 2
        %v725 = vsel %vm722, %v723, %v724
        %v726 = vrot.slane %v707, 2
        %v727 = vsel %vm722, %v724, %v726
        %728 = vrot.lane.b32.xlu0 %v725, 32
        %v729 = vpop.permute.xlu0 %728
        %730 = vrot.lane.b32.xlu0 %v727, 32
        %v731 = vpop.permute.xlu0 %730
        %vm734 = vcmask 130048
        %v735 = vsel %vm734, %v706, %v717
        %v736 = vsel %vm734, %v702, %v719
        %vm737 = vcmask 261120
        %v738 = vsel %vm737, %v735, %v729
        %v739 = vsel %vm737, %v736, %v731
        %v740 = vld [vmem:[%s5] sm:$0xff]
        %v741 = vld [vmem:[%s5 + $0x8] sm:$0xff]
        %v742 = vld [vmem:[%s5 + $0x10] sm:$0xff]
        %v743 = vld [vmem:[%s5 + $0x18] sm:$0xff]
        %v744 = vld [vmem:[%s5 + $0x20] sm:$0xff]
        %v745 = vld [vmem:[%s5 + $0x28] sm:$0xff]
        %v746 = vld [vmem:[%s6] sm:$0x1]
        %v748 = vlaneseq
        %v749 = vshrl.u32 %v748, 7
        %v750 = vsub.s32 0, %v749
        %v751 = vrot.slane %v746, %v750
        %vm753 = vcmask 392192
        %v755 = vsel %vm753, %v738, 0
        %v758 = vsel %vm753, %v739, 0
        %760 = vmatprep.subr.mxu0 0.0
        %761 = vmatpush1.msra.mxu0 %v740
        %762 = vmatprep.subr.mxu0 0.0
        %763 = vmatpush1.msra.mxu0 %v741
        %764 = vmatprep.subr.mxu0 0.0
        %765 = vmatpush1.msra.mxu0 %v742
        %766 = vmatprep.subr.mxu0 0.0
        %767 = vmatpush1.msra.mxu0 %v743
        %768 = vmatprep.subr.mxu0 0.0
        %769 = vmatpush1.msra.mxu0 %v744
        %770 = vmatprep.subr.mxu0 0.0
        %771 = vmatpush1.msra.mxu0 %v745
        %772 = vmatprep.subr.mxu0 0.0
        %773 = vmatpush1.msra.mxu0 0.0
        %774 = vmatprep.subr.mxu0 0.0
        %775 = vmatpush1.msra.mxu0 0.0
        %776 = vmatprep.subr.mxu0 0.0
        %777 = vmatpush1.msra.mxu0 0.0
        %778 = vmatprep.subr.mxu0 0.0
        %779 = vmatpush1.msra.mxu0 0.0
        %780 = vmatprep.subr.mxu0 0.0
        %781 = vmatpush1.msra.mxu0 0.0
        %782 = vmatprep.subr.mxu0 0.0
        %783 = vmatpush1.msra.mxu0 0.0
        %784 = vmatprep.subr.mxu0 0.0
        %785 = vmatpush1.msra.mxu0 0.0
        %786 = vmatprep.subr.mxu0 0.0
        %787 = vmatpush1.msra.mxu0 0.0
        %788 = vmatprep.subr.mxu0 0.0
        %789 = vmatpush1.msra.mxu0 0.0
        %790 = vmatprep.subr.mxu0 0.0
        %791 = vmatpush1.msra.mxu0 0.0
        %792 = vmatprep.subr.mxu0 0.0
        %793 = vmatpush1.msra.mxu0 0.0
        %794 = vmatprep.subr.mxu0 0.0
        %795 = vmatpush1.msra.mxu0 0.0
        %796 = vmatprep.subr.mxu0 0.0
        %797 = vmatpush1.msra.mxu0 0.0
        %798 = vmatprep.subr.mxu0 0.0
        %799 = vmatpush1.msra.mxu0 0.0
        %800 = vmatprep.subr.mxu0 0.0
        %801 = vmatpush1.msra.mxu0 0.0
        %802 = vmatprep.subr.mxu0 0.0
        %803 = vmatpush1.msra.mxu0 0.0
        %804 = vmatprep.subr.mxu0 0.0
        %805 = vmatpush1.msra.mxu0 0.0
        %806 = vmatprep.subr.mxu0 0.0
        %807 = vmatpush1.msra.mxu0 0.0
        %808 = vmatprep.subr.mxu0 0.0
        %809 = vmatpush1.msra.mxu0 0.0
        %810 = vmatprep.subr.mxu0 0.0
        %811 = vmatpush1.msra.mxu0 0.0
        %812 = vmatprep.subr.mxu0 0.0
        %813 = vmatpush1.msra.mxu0 0.0
        %814 = vmatprep.subr.mxu0 0.0
        %815 = vmatpush1.msra.mxu0 0.0
        %816 = vmatprep.subr.mxu0 0.0
        %817 = vmatpush1.msra.mxu0 0.0
        %818 = vmatprep.subr.mxu0 0.0
        %819 = vmatpush1.msra.mxu0 0.0
        %820 = vmatprep.subr.mxu0 0.0
        %821 = vmatpush1.msra.mxu0 0.0
        %822 = vmatprep.subr.mxu0 0.0
        %823 = vmatpush1.msra.mxu0 0.0
        %824 = vmatprep.mubr.f32.mxu0 0.0
        %825 = vmatmul.mubr.f32.gmra.mrb[0].mxu0 %v755
        %v826 = vpop.f32.mrb[0].mxu0
        %v827 = vadd.f32 %v751, %v826
        %v828 = vpop.f32.mrb[0].mxu0
        %829 = vmatprep.mubr.f32.mxu0 0.0
        %830 = vmatmul.mubr.f32.gmra.mrb[0].mxu0 %v758
        %v831 = vpop.f32.mrb[0].mxu0
        %v832 = vadd.f32 %v751, %v831
        %v833 = vpop.f32.mrb[0].mxu0
        %834 = vdwg.mxu0
        %v835 = vtanh.pop %v827
        %v836 = vtanh.pop %v832
        %v839 = vrot.slane %v835, 7
        %v840 = vrot.slane %v836, 7
        %v841 = vsel %vm699, %v839, %v840
        %v845 = vsel %vm699, 0.0, %v839
        %v846 = vsel %vm699, %v840, 0.0
        %v849 = vrot.slane %v845, 1
        %v850 = vrot.slane %v841, 1
        %v851 = vsel %vm710, %v849, %v850
        %v852 = vrot.slane %v846, 1
        %v853 = vsel %vm710, %v850, %v852
        %854 = vrot.lane.b32.xlu0 %v851, 16
        %v855 = vpop.permute.xlu0 %854
        %856 = vrot.lane.b32.xlu0 %v853, 16
        %v857 = vpop.permute.xlu0 %856
        %v860 = vrot.slane %v845, 2
        %v861 = vrot.slane %v841, 2
        %v862 = vsel %vm722, %v860, %v861
        %v863 = vrot.slane %v846, 2
        %v864 = vsel %vm722, %v861, %v863
        %865 = vrot.lane.b32.xlu0 %v862, 32
        %v866 = vpop.permute.xlu0 %865
        %867 = vrot.lane.b32.xlu0 %v864, 32
        %v868 = vpop.permute.xlu0 %867
        %v871 = vsel %vm734, %v845, %v855
        %v872 = vsel %vm734, %v841, %v857
        %v873 = vsel %vm737, %v871, %v866
        %v874 = vsel %vm737, %v872, %v868
        %v875 = vld [vmem:[%s7] sm:$0xff]
        %v876 = vld [vmem:[%s7 + $0x8] sm:$0xff]
        %v877 = vld [vmem:[%s7 + $0x10] sm:$0xff]
        %v878 = vld [vmem:[%s7 + $0x18] sm:$0xff]
        %v879 = vld [vmem:[%s7 + $0x20] sm:$0xff]
        %v880 = vld [vmem:[%s7 + $0x28] sm:$0xff]
        %v881 = vld [vmem:[%s8] sm:$0x1]
        %v883 = vlaneseq
        %v884 = vshrl.u32 %v883, 7
        %v885 = vsub.s32 0, %v884
        %v886 = vrot.slane %v881, %v885
        %v889 = vsel %vm753, %v873, 0
        %v892 = vsel %vm753, %v874, 0
        %894 = vmatprep.subr.mxu0 0.0
        %895 = vmatpush1.msra.mxu0 %v875
        %896 = vmatprep.subr.mxu0 0.0
        %897 = vmatpush1.msra.mxu0 %v876
        %898 = vmatprep.subr.mxu0 0.0
        %899 = vmatpush1.msra.mxu0 %v877
        %900 = vmatprep.subr.mxu0 0.0
        %901 = vmatpush1.msra.mxu0 %v878
        %902 = vmatprep.subr.mxu0 0.0
        %903 = vmatpush1.msra.mxu0 %v879
        %904 = vmatprep.subr.mxu0 0.0
        %905 = vmatpush1.msra.mxu0 %v880
        %906 = vmatprep.subr.mxu0 0.0
        %907 = vmatpush1.msra.mxu0 0.0
        %908 = vmatprep.subr.mxu0 0.0
        %909 = vmatpush1.msra.mxu0 0.0
        %910 = vmatprep.subr.mxu0 0.0
        %911 = vmatpush1.msra.mxu0 0.0
        %912 = vmatprep.subr.mxu0 0.0
        %913 = vmatpush1.msra.mxu0 0.0
        %914 = vmatprep.subr.mxu0 0.0
        %915 = vmatpush1.msra.mxu0 0.0
        %916 = vmatprep.subr.mxu0 0.0
        %917 = vmatpush1.msra.mxu0 0.0
        %918 = vmatprep.subr.mxu0 0.0
        %919 = vmatpush1.msra.mxu0 0.0
        %920 = vmatprep.subr.mxu0 0.0
        %921 = vmatpush1.msra.mxu0 0.0
        %922 = vmatprep.subr.mxu0 0.0
        %923 = vmatpush1.msra.mxu0 0.0
        %924 = vmatprep.subr.mxu0 0.0
        %925 = vmatpush1.msra.mxu0 0.0
        %926 = vmatprep.subr.mxu0 0.0
        %927 = vmatpush1.msra.mxu0 0.0
        %928 = vmatprep.subr.mxu0 0.0
        %929 = vmatpush1.msra.mxu0 0.0
        %930 = vmatprep.subr.mxu0 0.0
        %931 = vmatpush1.msra.mxu0 0.0
        %932 = vmatprep.subr.mxu0 0.0
        %933 = vmatpush1.msra.mxu0 0.0
        %934 = vmatprep.subr.mxu0 0.0
        %935 = vmatpush1.msra.mxu0 0.0
        %936 = vmatprep.subr.mxu0 0.0
        %937 = vmatpush1.msra.mxu0 0.0
        %938 = vmatprep.subr.mxu0 0.0
        %939 = vmatpush1.msra.mxu0 0.0
        %940 = vmatprep.subr.mxu0 0.0
        %941 = vmatpush1.msra.mxu0 0.0
        %942 = vmatprep.subr.mxu0 0.0
        %943 = vmatpush1.msra.mxu0 0.0
        %944 = vmatprep.subr.mxu0 0.0
        %945 = vmatpush1.msra.mxu0 0.0
        %946 = vmatprep.subr.mxu0 0.0
        %947 = vmatpush1.msra.mxu0 0.0
        %948 = vmatprep.subr.mxu0 0.0
        %949 = vmatpush1.msra.mxu0 0.0
        %950 = vmatprep.subr.mxu0 0.0
        %951 = vmatpush1.msra.mxu0 0.0
        %952 = vmatprep.subr.mxu0 0.0
        %953 = vmatpush1.msra.mxu0 0.0
        %954 = vmatprep.subr.mxu0 0.0
        %955 = vmatpush1.msra.mxu0 0.0
        %956 = vmatprep.subr.mxu0 0.0
        %957 = vmatpush1.msra.mxu0 0.0
        %958 = vmatprep.mubr.f32.mxu0 0.0
        %959 = vmatmul.mubr.f32.gmra.mrb[0].mxu0 %v889
        %v960 = vpop.f32.mrb[0].mxu0
        %v961 = vadd.f32 %v886, %v960
        %v962 = vpop.f32.mrb[0].mxu0
        %963 = vmatprep.mubr.f32.mxu0 0.0
        %964 = vmatmul.mubr.f32.gmra.mrb[0].mxu0 %v892
        %v965 = vpop.f32.mrb[0].mxu0
        %v966 = vadd.f32 %v886, %v965
        %v967 = vpop.f32.mrb[0].mxu0
        %968 = vdwg.mxu0
        %v969 = vtanh.pop %v961
        %v970 = vtanh.pop %v966
        %v973 = vrot.slane %v969, 7
        %v974 = vrot.slane %v970, 7
        %v975 = vsel %vm699, %v973, %v974
        %v979 = vsel %vm699, 0.0, %v973
        %v980 = vsel %vm699, %v974, 0.0
        %v983 = vrot.slane %v979, 1
        %v984 = vrot.slane %v975, 1
        %v985 = vsel %vm710, %v983, %v984
        %v986 = vrot.slane %v980, 1
        %v987 = vsel %vm710, %v984, %v986
        %988 = vrot.lane.b32.xlu0 %v985, 16
        %v989 = vpop.permute.xlu0 %988
        %990 = vrot.lane.b32.xlu0 %v987, 16
        %v991 = vpop.permute.xlu0 %990
        %v994 = vrot.slane %v979, 2
        %v995 = vrot.slane %v975, 2
        %v996 = vsel %vm722, %v994, %v995
        %v997 = vrot.slane %v980, 2
        %v998 = vsel %vm722, %v995, %v997
        %999 = vrot.lane.b32.xlu0 %v996, 32
        %v1000 = vpop.permute.xlu0 %999
        %1001 = vrot.lane.b32.xlu0 %v998, 32
        %v1002 = vpop.permute.xlu0 %1001
        %v1005 = vsel %vm734, %v979, %v989
        %v1006 = vsel %vm734, %v975, %v991
        %v1007 = vsel %vm737, %v1005, %v1000
        %v1008 = vsel %vm737, %v1006, %v1002
        %v1009 = vld [vmem:[%s9] sm:$0xff]
        %v1010 = vld [vmem:[%s9 + $0x8] sm:$0xff]
        %v1011 = vld [vmem:[%s9 + $0x10] sm:$0xff]
        %v1012 = vld [vmem:[%s9 + $0x18] sm:$0xff]
        %v1013 = vld [vmem:[%s9 + $0x20] sm:$0xff]
        %v1014 = vld [vmem:[%s9 + $0x28] sm:$0xff]
        %v1015 = vld [vmem:[%s10] sm:$0x1]
        %v1017 = vlaneseq
        %v1018 = vshrl.u32 %v1017, 7
        %v1019 = vsub.s32 0, %v1018
        %v1020 = vrot.slane %v1015, %v1019
        %v1023 = vsel %vm753, %v1007, 0
        %v1026 = vsel %vm753, %v1008, 0
        %1028 = vmatprep.subr.mxu0 0.0
        %1029 = vmatpush1.msra.mxu0 %v1009
        %1030 = vmatprep.subr.mxu0 0.0
        %1031 = vmatpush1.msra.mxu0 %v1010
        %1032 = vmatprep.subr.mxu0 0.0
        %1033 = vmatpush1.msra.mxu0 %v1011
        %1034 = vmatprep.subr.mxu0 0.0
        %1035 = vmatpush1.msra.mxu0 %v1012
        %1036 = vmatprep.subr.mxu0 0.0
        %1037 = vmatpush1.msra.mxu0 %v1013
        %1038 = vmatprep.subr.mxu0 0.0
        %1039 = vmatpush1.msra.mxu0 %v1014
        %1040 = vmatprep.subr.mxu0 0.0
        %1041 = vmatpush1.msra.mxu0 0.0
        %1042 = vmatprep.subr.mxu0 0.0
        %1043 = vmatpush1.msra.mxu0 0.0
        %1044 = vmatprep.subr.mxu0 0.0
        %1045 = vmatpush1.msra.mxu0 0.0
        %1046 = vmatprep.subr.mxu0 0.0
        %1047 = vmatpush1.msra.mxu0 0.0
        %1048 = vmatprep.subr.mxu0 0.0
        %1049 = vmatpush1.msra.mxu0 0.0
        %1050 = vmatprep.subr.mxu0 0.0
        %1051 = vmatpush1.msra.mxu0 0.0
        %1052 = vmatprep.subr.mxu0 0.0
        %1053 = vmatpush1.msra.mxu0 0.0
        %1054 = vmatprep.subr.mxu0 0.0
        %1055 = vmatpush1.msra.mxu0 0.0
        %1056 = vmatprep.subr.mxu0 0.0
        %1057 = vmatpush1.msra.mxu0 0.0
        %1058 = vmatprep.subr.mxu0 0.0
        %1059 = vmatpush1.msra.mxu0 0.0
        %1060 = vmatprep.subr.mxu0 0.0
        %1061 = vmatpush1.msra.mxu0 0.0
        %1062 = vmatprep.subr.mxu0 0.0
        %1063 = vmatpush1.msra.mxu0 0.0
        %1064 = vmatprep.subr.mxu0 0.0
        %1065 = vmatpush1.msra.mxu0 0.0
        %1066 = vmatprep.subr.mxu0 0.0
        %1067 = vmatpush1.msra.mxu0 0.0
        %1068 = vmatprep.subr.mxu0 0.0
        %1069 = vmatpush1.msra.mxu0 0.0
        %1070 = vmatprep.subr.mxu0 0.0
        %1071 = vmatpush1.msra.mxu0 0.0
        %1072 = vmatprep.subr.mxu0 0.0
        %1073 = vmatpush1.msra.mxu0 0.0
        %1074 = vmatprep.subr.mxu0 0.0
        %1075 = vmatpush1.msra.mxu0 0.0
        %1076 = vmatprep.subr.mxu0 0.0
        %1077 = vmatpush1.msra.mxu0 0.0
        %1078 = vmatprep.subr.mxu0 0.0
        %1079 = vmatpush1.msra.mxu0 0.0
        %1080 = vmatprep.subr.mxu0 0.0
        %1081 = vmatpush1.msra.mxu0 0.0
        %1082 = vmatprep.subr.mxu0 0.0
        %1083 = vmatpush1.msra.mxu0 0.0
        %1084 = vmatprep.subr.mxu0 0.0
        %1085 = vmatpush1.msra.mxu0 0.0
        %1086 = vmatprep.subr.mxu0 0.0
        %1087 = vmatpush1.msra.mxu0 0.0
        %1088 = vmatprep.subr.mxu0 0.0
        %1089 = vmatpush1.msra.mxu0 0.0
        %1090 = vmatprep.subr.mxu0 0.0
        %1091 = vmatpush1.msra.mxu0 0.0
        %1092 = vmatprep.mubr.f32.mxu0 0.0
        %1093 = vmatmul.mubr.f32.gmra.mrb[0].mxu0 %v1023
        %v1094 = vpop.f32.mrb[0].mxu0
        %v1095 = vadd.f32 %v1020, %v1094
        %v1096 = vpop.f32.mrb[0].mxu0
        %1097 = vmatprep.mubr.f32.mxu0 0.0
        %1098 = vmatmul.mubr.f32.gmra.mrb[0].mxu0 %v1026
        %v1099 = vpop.f32.mrb[0].mxu0
        %v1100 = vadd.f32 %v1020, %v1099
        %v1101 = vpop.f32.mrb[0].mxu0
        %1102 = vdwg.mxu0
        %v1103 = vld [vmem:[%s11] sm:$0xff]
        %v1104 = vld [vmem:[%s11 + $0x8] sm:$0xff]
        %v1105 = vld [vmem:[%s12] sm:$0x1]
        %v1107 = vlaneseq
        %v1108 = vshrl.u32 %v1107, 7
        %v1109 = vsub.s32 0, %v1108
        %v1110 = vrot.slane %v1105, %v1109
        %v1112 = vsel %vm734, %v835, 0
        %v1114 = vsel %vm734, %v836, 0
        %1116 = vmatprep.subr.mxu0 0.0
        %1117 = vmatpush1.msra.mxu0 %v1103
        %1118 = vmatprep.subr.mxu0 0.0
        %1119 = vmatpush1.msra.mxu0 %v1104
        %1120 = vmatprep.subr.mxu0 0.0
        %1121 = vmatpush1.msra.mxu0 0.0
        %1122 = vmatprep.subr.mxu0 0.0
        %1123 = vmatpush1.msra.mxu0 0.0
        %1124 = vmatprep.subr.mxu0 0.0
        %1125 = vmatpush1.msra.mxu0 0.0
        %1126 = vmatprep.subr.mxu0 0.0
        %1127 = vmatpush1.msra.mxu0 0.0
        %1128 = vmatprep.subr.mxu0 0.0
        %1129 = vmatpush1.msra.mxu0 0.0
        %1130 = vmatprep.subr.mxu0 0.0
        %1131 = vmatpush1.msra.mxu0 0.0
        %1132 = vmatprep.subr.mxu0 0.0
        %1133 = vmatpush1.msra.mxu0 0.0
        %1134 = vmatprep.subr.mxu0 0.0
        %1135 = vmatpush1.msra.mxu0 0.0
        %1136 = vmatprep.subr.mxu0 0.0
        %1137 = vmatpush1.msra.mxu0 0.0
        %1138 = vmatprep.subr.mxu0 0.0
        %1139 = vmatpush1.msra.mxu0 0.0
        %1140 = vmatprep.subr.mxu0 0.0
        %1141 = vmatpush1.msra.mxu0 0.0
        %1142 = vmatprep.subr.mxu0 0.0
        %1143 = vmatpush1.msra.mxu0 0.0
        %1144 = vmatprep.subr.mxu0 0.0
        %1145 = vmatpush1.msra.mxu0 0.0
        %1146 = vmatprep.subr.mxu0 0.0
        %1147 = vmatpush1.msra.mxu0 0.0
        %1148 = vmatprep.subr.mxu0 0.0
        %1149 = vmatpush1.msra.mxu0 0.0
        %1150 = vmatprep.subr.mxu0 0.0
        %1151 = vmatpush1.msra.mxu0 0.0
        %1152 = vmatprep.subr.mxu0 0.0
        %1153 = vmatpush1.msra.mxu0 0.0
        %1154 = vmatprep.subr.mxu0 0.0
        %1155 = vmatpush1.msra.mxu0 0.0
        %1156 = vmatprep.subr.mxu0 0.0
        %1157 = vmatpush1.msra.mxu0 0.0
        %1158 = vmatprep.subr.mxu0 0.0
        %1159 = vmatpush1.msra.mxu0 0.0
        %1160 = vmatprep.subr.mxu0 0.0
        %1161 = vmatpush1.msra.mxu0 0.0
        %1162 = vmatprep.subr.mxu0 0.0
        %1163 = vmatpush1.msra.mxu0 0.0
        %1164 = vmatprep.subr.mxu0 0.0
        %1165 = vmatpush1.msra.mxu0 0.0
        %1166 = vmatprep.subr.mxu0 0.0
        %1167 = vmatpush1.msra.mxu0 0.0
        %1168 = vmatprep.subr.mxu0 0.0
        %1169 = vmatpush1.msra.mxu0 0.0
        %1170 = vmatprep.subr.mxu0 0.0
        %1171 = vmatpush1.msra.mxu0 0.0
        %1172 = vmatprep.subr.mxu0 0.0
        %1173 = vmatpush1.msra.mxu0 0.0
        %1174 = vmatprep.subr.mxu0 0.0
        %1175 = vmatpush1.msra.mxu0 0.0
        %1176 = vmatprep.subr.mxu0 0.0
        %1177 = vmatpush1.msra.mxu0 0.0
        %1178 = vmatprep.subr.mxu0 0.0
        %1179 = vmatpush1.msra.mxu0 0.0
        %1180 = vmatprep.mubr.f32.mxu0 0.0
        %1181 = vmatmul.mubr.f32.gmra.mrb[0].mxu0 %v1112
        %v1182 = vpop.f32.mrb[0].mxu0
        %v1183 = vadd.f32 %v1110, %v1182
        %v1184 = vpop.f32.mrb[0].mxu0
        %1185 = vmatprep.mubr.f32.mxu0 0.0
        %1186 = vmatmul.mubr.f32.gmra.mrb[0].mxu0 %v1114
        %v1187 = vpop.f32.mrb[0].mxu0
        %v1188 = vadd.f32 %v1110, %v1187
        %v1189 = vpop.f32.mrb[0].mxu0
        %1190 = vdwg.mxu0
        %v1191 = vadd.f32 %v1095, %v1183
        %v1192 = vadd.f32 %v1100, %v1188
        %v1193 = vtanh.pop %v1191
        %v1194 = vtanh.pop %v1192
        %vm1195 = vcmask 1041408
        %v1196 = vrot.slane %v695, 6
        %v1197 = vrot.slane %v696, 6
        %v1198 = vsel %vm1195, %v1196, %v1197
        %v1202 = vsel %vm1195, 0.0, %v1196
        %v1203 = vsel %vm1195, %v1197, 0.0
        %v1206 = vrot.slane %v1202, 1
        %v1207 = vrot.slane %v1198, 1
        %v1208 = vsel %vm710, %v1206, %v1207
        %v1209 = vrot.slane %v1203, 1
        %v1210 = vsel %vm710, %v1207, %v1209
        %1211 = vrot.lane.b32.xlu0 %v1208, 16
        %v1212 = vpop.permute.xlu0 %1211
        %1213 = vrot.lane.b32.xlu0 %v1210, 16
        %v1214 = vpop.permute.xlu0 %1213
        %v1217 = vrot.slane %v1202, 2
        %v1218 = vrot.slane %v1198, 2
        %v1219 = vsel %vm722, %v1217, %v1218
        %v1220 = vrot.slane %v1203, 2
        %v1221 = vsel %vm722, %v1218, %v1220
        %1222 = vrot.lane.b32.xlu0 %v1219, 32
        %v1223 = vpop.permute.xlu0 %1222
        %1224 = vrot.lane.b32.xlu0 %v1221, 32
        %v1225 = vpop.permute.xlu0 %1224
        %vm1228 = vcmask 1044480
        %v1229 = vrot.slane %v1202, 3
        %v1230 = vrot.slane %v1198, 3
        %v1231 = vsel %vm1228, %v1229, %v1230
        %v1232 = vrot.slane %v1203, 3
        %v1233 = vsel %vm1228, %v1230, %v1232
        %1234 = vrot.lane.b32.xlu0 %v1231, 48
        %v1235 = vpop.permute.xlu0 %1234
        %1236 = vrot.lane.b32.xlu0 %v1233, 48
        %v1237 = vpop.permute.xlu0 %1236
        %vm1240 = vcmask 1043456
        %v1241 = vrot.slane %v1202, 4
        %v1242 = vrot.slane %v1198, 4
        %v1243 = vsel %vm1240, %v1241, %v1242
        %v1244 = vrot.slane %v1203, 4
        %v1245 = vsel %vm1240, %v1242, %v1244
        %1246 = vrot.lane.b32.xlu0 %v1243, 64
        %v1247 = vpop.permute.xlu0 %1246
        %1248 = vrot.lane.b32.xlu0 %v1245, 64
        %v1249 = vpop.permute.xlu0 %1248
        %v1252 = vsel %vm734, %v1202, %v1212
        %v1253 = vsel %vm734, %v1198, %v1214
        %v1254 = vsel %vm737, %v1252, %v1223
        %v1255 = vsel %vm737, %v1253, %v1225
        %v1256 = vsel %vm753, %v1254, %v1235
        %v1257 = vsel %vm753, %v1255, %v1237
        %vm1258 = vcmask 523264
        %v1259 = vsel %vm1258, %v1256, %v1247
        %v1260 = vsel %vm1258, %v1257, %v1249
        %v1261 = vld [vmem:[%s13] sm:$0xff]
        %v1262 = vld [vmem:[%s13 + $0x8] sm:$0xff]
        %v1263 = vld [vmem:[%s13 + $0x10] sm:$0xff]
        %v1264 = vld [vmem:[%s13 + $0x18] sm:$0xff]
        %v1265 = vld [vmem:[%s13 + $0x20] sm:$0xff]
        %v1266 = vld [vmem:[%s13 + $0x28] sm:$0xff]
        %v1267 = vld [vmem:[%s13 + $0x30] sm:$0xff]
        %v1268 = vld [vmem:[%s13 + $0x38] sm:$0xff]
        %v1269 = vld [vmem:[%s13 + $0x40] sm:$0xff]
        %v1270 = vld [vmem:[%s13 + $0x48] sm:$0xff]
        %v1271 = vld [vmem:[%s14] sm:$0x1]
        %v1273 = vlaneseq
        %v1274 = vshrl.u32 %v1273, 7
        %v1275 = vsub.s32 0, %v1274
        %v1276 = vrot.slane %v1271, %v1275
        %vm1278 = vcmask 654336
        %v1280 = vsel %vm1278, %v1259, 0
        %v1283 = vsel %vm1278, %v1260, 0
        %1285 = vmatprep.subr.mxu0 0.0
        %1286 = vmatpush1.msra.mxu0 %v1261
        %1287 = vmatprep.subr.mxu0 0.0
        %1288 = vmatpush1.msra.mxu0 %v1262
        %1289 = vmatprep.subr.mxu0 0.0
        %1290 = vmatpush1.msra.mxu0 %v1263
        %1291 = vmatprep.subr.mxu0 0.0
        %1292 = vmatpush1.msra.mxu0 %v1264
        %1293 = vmatprep.subr.mxu0 0.0
        %1294 = vmatpush1.msra.mxu0 %v1265
        %1295 = vmatprep.subr.mxu0 0.0
        %1296 = vmatpush1.msra.mxu0 %v1266
        %1297 = vmatprep.subr.mxu0 0.0
        %1298 = vmatpush1.msra.mxu0 %v1267
        %1299 = vmatprep.subr.mxu0 0.0
        %1300 = vmatpush1.msra.mxu0 %v1268
        %1301 = vmatprep.subr.mxu0 0.0
        %1302 = vmatpush1.msra.mxu0 %v1269
        %1303 = vmatprep.subr.mxu0 0.0
        %1304 = vmatpush1.msra.mxu0 %v1270
        %1305 = vmatprep.subr.mxu0 0.0
        %1306 = vmatpush1.msra.mxu0 0.0
        %1307 = vmatprep.subr.mxu0 0.0
        %1308 = vmatpush1.msra.mxu0 0.0
        %1309 = vmatprep.subr.mxu0 0.0
        %1310 = vmatpush1.msra.mxu0 0.0
        %1311 = vmatprep.subr.mxu0 0.0
        %1312 = vmatpush1.msra.mxu0 0.0
        %1313 = vmatprep.subr.mxu0 0.0
        %1314 = vmatpush1.msra.mxu0 0.0
        %1315 = vmatprep.subr.mxu0 0.0
        %1316 = vmatpush1.msra.mxu0 0.0
        %1317 = vmatprep.subr.mxu0 0.0
        %1318 = vmatpush1.msra.mxu0 0.0
        %1319 = vmatprep.subr.mxu0 0.0
        %1320 = vmatpush1.msra.mxu0 0.0
        %1321 = vmatprep.subr.mxu0 0.0
        %1322 = vmatpush1.msra.mxu0 0.0
        %1323 = vmatprep.subr.mxu0 0.0
        %1324 = vmatpush1.msra.mxu0 0.0
        %1325 = vmatprep.subr.mxu0 0.0
        %1326 = vmatpush1.msra.mxu0 0.0
        %1327 = vmatprep.subr.mxu0 0.0
        %1328 = vmatpush1.msra.mxu0 0.0
        %1329 = vmatprep.subr.mxu0 0.0
        %1330 = vmatpush1.msra.mxu0 0.0
        %1331 = vmatprep.subr.mxu0 0.0
        %1332 = vmatpush1.msra.mxu0 0.0
        %1333 = vmatprep.subr.mxu0 0.0
        %1334 = vmatpush1.msra.mxu0 0.0
        %1335 = vmatprep.subr.mxu0 0.0
        %1336 = vmatpush1.msra.mxu0 0.0
        %1337 = vmatprep.subr.mxu0 0.0
        %1338 = vmatpush1.msra.mxu0 0.0
        %1339 = vmatprep.subr.mxu0 0.0
        %1340 = vmatpush1.msra.mxu0 0.0
        %1341 = vmatprep.subr.mxu0 0.0
        %1342 = vmatpush1.msra.mxu0 0.0
        %1343 = vmatprep.subr.mxu0 0.0
        %1344 = vmatpush1.msra.mxu0 0.0
        %1345 = vmatprep.subr.mxu0 0.0
        %1346 = vmatpush1.msra.mxu0 0.0
        %1347 = vmatprep.subr.mxu0 0.0
        %1348 = vmatpush1.msra.mxu0 0.0
        %1349 = vmatprep.mubr.f32.mxu0 0.0
        %1350 = vmatmul.mubr.f32.gmra.mrb[0].mxu0 %v1280
        %v1351 = vpop.f32.mrb[0].mxu0
        %v1352 = vadd.f32 %v1276, %v1351
        %v1353 = vpop.f32.mrb[0].mxu0
        %1354 = vmatprep.mubr.f32.mxu0 0.0
        %1355 = vmatmul.mubr.f32.gmra.mrb[0].mxu0 %v1283
        %v1356 = vpop.f32.mrb[0].mxu0
        %v1357 = vadd.f32 %v1276, %v1356
        %v1358 = vpop.f32.mrb[0].mxu0
        %1359 = vdwg.mxu0
        %v1360 = vtanh.pop %v1352
        %v1361 = vtanh.pop %v1357
        %v1364 = vrot.slane %v1360, 6
        %v1365 = vrot.slane %v1361, 6
        %v1366 = vsel %vm1195, %v1364, %v1365
        %v1370 = vsel %vm1195, 0.0, %v1364
        %v1371 = vsel %vm1195, %v1365, 0.0
        %v1374 = vrot.slane %v1370, 1
        %v1375 = vrot.slane %v1366, 1
        %v1376 = vsel %vm710, %v1374, %v1375
        %v1377 = vrot.slane %v1371, 1
        %v1378 = vsel %vm710, %v1375, %v1377
        %1379 = vrot.lane.b32.xlu0 %v1376, 16
        %v1380 = vpop.permute.xlu0 %1379
        %1381 = vrot.lane.b32.xlu0 %v1378, 16
        %v1382 = vpop.permute.xlu0 %1381
        %v1385 = vrot.slane %v1370, 2
        %v1386 = vrot.slane %v1366, 2
        %v1387 = vsel %vm722, %v1385, %v1386
        %v1388 = vrot.slane %v1371, 2
        %v1389 = vsel %vm722, %v1386, %v1388
        %1390 = vrot.lane.b32.xlu0 %v1387, 32
        %v1391 = vpop.permute.xlu0 %1390
        %1392 = vrot.lane.b32.xlu0 %v1389, 32
        %v1393 = vpop.permute.xlu0 %1392
        %v1396 = vrot.slane %v1370, 3
        %v1397 = vrot.slane %v1366, 3
        %v1398 = vsel %vm1228, %v1396, %v1397
        %v1399 = vrot.slane %v1371, 3
        %v1400 = vsel %vm1228, %v1397, %v1399
        %1401 = vrot.lane.b32.xlu0 %v1398, 48
        %v1402 = vpop.permute.xlu0 %1401
        %1403 = vrot.lane.b32.xlu0 %v1400, 48
        %v1404 = vpop.permute.xlu0 %1403
        %v1407 = vrot.slane %v1370, 4
        %v1408 = vrot.slane %v1366, 4
        %v1409 = vsel %vm1240, %v1407, %v1408
        %v1410 = vrot.slane %v1371, 4
        %v1411 = vsel %vm1240, %v1408, %v1410
        %1412 = vrot.lane.b32.xlu0 %v1409, 64
        %v1413 = vpop.permute.xlu0 %1412
        %1414 = vrot.lane.b32.xlu0 %v1411, 64
        %v1415 = vpop.permute.xlu0 %1414
        %v1418 = vsel %vm734, %v1370, %v1380
        %v1419 = vsel %vm734, %v1366, %v1382
        %v1420 = vsel %vm737, %v1418, %v1391
        %v1421 = vsel %vm737, %v1419, %v1393
        %v1422 = vsel %vm753, %v1420, %v1402
        %v1423 = vsel %vm753, %v1421, %v1404
        %v1424 = vsel %vm1258, %v1422, %v1413
        %v1425 = vsel %vm1258, %v1423, %v1415
        %v1426 = vld [vmem:[%s15] sm:$0xff]
        %v1427 = vld [vmem:[%s15 + $0x8] sm:$0xff]
        %v1428 = vld [vmem:[%s15 + $0x10] sm:$0xff]
        %v1429 = vld [vmem:[%s15 + $0x18] sm:$0xff]
        %v1430 = vld [vmem:[%s15 + $0x20] sm:$0xff]
        %v1431 = vld [vmem:[%s15 + $0x28] sm:$0xff]
        %v1432 = vld [vmem:[%s15 + $0x30] sm:$0xff]
        %v1433 = vld [vmem:[%s15 + $0x38] sm:$0xff]
        %v1434 = vld [vmem:[%s15 + $0x40] sm:$0xff]
        %v1435 = vld [vmem:[%s15 + $0x48] sm:$0xff]
        %v1436 = vld [vmem:[%s16] sm:$0x1]
        %v1438 = vlaneseq
        %v1439 = vshrl.u32 %v1438, 7
        %v1440 = vsub.s32 0, %v1439
        %v1441 = vrot.slane %v1436, %v1440
        %v1444 = vsel %vm1278, %v1424, 0
        %v1447 = vsel %vm1278, %v1425, 0
        %1449 = vmatprep.subr.mxu0 0.0
        %1450 = vmatpush1.msra.mxu0 %v1426
        %1451 = vmatprep.subr.mxu0 0.0
        %1452 = vmatpush1.msra.mxu0 %v1427
        %1453 = vmatprep.subr.mxu0 0.0
        %1454 = vmatpush1.msra.mxu0 %v1428
        %1455 = vmatprep.subr.mxu0 0.0
        %1456 = vmatpush1.msra.mxu0 %v1429
        %1457 = vmatprep.subr.mxu0 0.0
        %1458 = vmatpush1.msra.mxu0 %v1430
        %1459 = vmatprep.subr.mxu0 0.0
        %1460 = vmatpush1.msra.mxu0 %v1431
        %1461 = vmatprep.subr.mxu0 0.0
        %1462 = vmatpush1.msra.mxu0 %v1432
        %1463 = vmatprep.subr.mxu0 0.0
        %1464 = vmatpush1.msra.mxu0 %v1433
        %1465 = vmatprep.subr.mxu0 0.0
        %1466 = vmatpush1.msra.mxu0 %v1434
        %1467 = vmatprep.subr.mxu0 0.0
        %1468 = vmatpush1.msra.mxu0 %v1435
        %1469 = vmatprep.subr.mxu0 0.0
        %1470 = vmatpush1.msra.mxu0 0.0
        %1471 = vmatprep.subr.mxu0 0.0
        %1472 = vmatpush1.msra.mxu0 0.0
        %1473 = vmatprep.subr.mxu0 0.0
        %1474 = vmatpush1.msra.mxu0 0.0
        %1475 = vmatprep.subr.mxu0 0.0
        %1476 = vmatpush1.msra.mxu0 0.0
        %1477 = vmatprep.subr.mxu0 0.0
        %1478 = vmatpush1.msra.mxu0 0.0
        %1479 = vmatprep.subr.mxu0 0.0
        %1480 = vmatpush1.msra.mxu0 0.0
        %1481 = vmatprep.subr.mxu0 0.0
        %1482 = vmatpush1.msra.mxu0 0.0
        %1483 = vmatprep.subr.mxu0 0.0
        %1484 = vmatpush1.msra.mxu0 0.0
        %1485 = vmatprep.subr.mxu0 0.0
        %1486 = vmatpush1.msra.mxu0 0.0
        %1487 = vmatprep.subr.mxu0 0.0
        %1488 = vmatpush1.msra.mxu0 0.0
        %1489 = vmatprep.subr.mxu0 0.0
        %1490 = vmatpush1.msra.mxu0 0.0
        %1491 = vmatprep.subr.mxu0 0.0
        %1492 = vmatpush1.msra.mxu0 0.0
        %1493 = vmatprep.subr.mxu0 0.0
        %1494 = vmatpush1.msra.mxu0 0.0
        %1495 = vmatprep.subr.mxu0 0.0
        %1496 = vmatpush1.msra.mxu0 0.0
        %1497 = vmatprep.subr.mxu0 0.0
        %1498 = vmatpush1.msra.mxu0 0.0
        %1499 = vmatprep.subr.mxu0 0.0
        %1500 = vmatpush1.msra.mxu0 0.0
        %1501 = vmatprep.subr.mxu0 0.0
        %1502 = vmatpush1.msra.mxu0 0.0
        %1503 = vmatprep.subr.mxu0 0.0
        %1504 = vmatpush1.msra.mxu0 0.0
        %1505 = vmatprep.subr.mxu0 0.0
        %1506 = vmatpush1.msra.mxu0 0.0
        %1507 = vmatprep.subr.mxu0 0.0
        %1508 = vmatpush1.msra.mxu0 0.0
        %1509 = vmatprep.subr.mxu0 0.0
        %1510 = vmatpush1.msra.mxu0 0.0
        %1511 = vmatprep.subr.mxu0 0.0
        %1512 = vmatpush1.msra.mxu0 0.0
        %1513 = vmatprep.mubr.f32.mxu0 0.0
        %1514 = vmatmul.mubr.f32.gmra.mrb[0].mxu0 %v1444
        %v1515 = vpop.f32.mrb[0].mxu0
        %v1516 = vadd.f32 %v1441, %v1515
        %v1517 = vpop.f32.mrb[0].mxu0
        %1518 = vmatprep.mubr.f32.mxu0 0.0
        %1519 = vmatmul.mubr.f32.gmra.mrb[0].mxu0 %v1447
        %v1520 = vpop.f32.mrb[0].mxu0
        %v1521 = vadd.f32 %v1441, %v1520
        %v1522 = vpop.f32.mrb[0].mxu0
        %1523 = vdwg.mxu0
        %v1524 = vtanh.pop %v1516
        %v1525 = vtanh.pop %v1521
        %v1528 = vrot.slane %v1524, 6
        %v1529 = vrot.slane %v1525, 6
        %v1530 = vsel %vm1195, %v1528, %v1529
        %v1534 = vsel %vm1195, 0.0, %v1528
        %v1535 = vsel %vm1195, %v1529, 0.0
        %v1538 = vrot.slane %v1534, 1
        %v1539 = vrot.slane %v1530, 1
        %v1540 = vsel %vm710, %v1538, %v1539
        %v1541 = vrot.slane %v1535, 1
        %v1542 = vsel %vm710, %v1539, %v1541
        %1543 = vrot.lane.b32.xlu0 %v1540, 16
        %v1544 = vpop.permute.xlu0 %1543
        %1545 = vrot.lane.b32.xlu0 %v1542, 16
        %v1546 = vpop.permute.xlu0 %1545
        %v1549 = vrot.slane %v1534, 2
        %v1550 = vrot.slane %v1530, 2
        %v1551 = vsel %vm722, %v1549, %v1550
        %v1552 = vrot.slane %v1535, 2
        %v1553 = vsel %vm722, %v1550, %v1552
        %1554 = vrot.lane.b32.xlu0 %v1551, 32
        %v1555 = vpop.permute.xlu0 %1554
        %1556 = vrot.lane.b32.xlu0 %v1553, 32
        %v1557 = vpop.permute.xlu0 %1556
        %v1560 = vrot.slane %v1534, 3
        %v1561 = vrot.slane %v1530, 3
        %v1562 = vsel %vm1228, %v1560, %v1561
        %v1563 = vrot.slane %v1535, 3
        %v1564 = vsel %vm1228, %v1561, %v1563
        %1565 = vrot.lane.b32.xlu0 %v1562, 48
        %v1566 = vpop.permute.xlu0 %1565
        %1567 = vrot.lane.b32.xlu0 %v1564, 48
        %v1568 = vpop.permute.xlu0 %1567
        %v1571 = vrot.slane %v1534, 4
        %v1572 = vrot.slane %v1530, 4
        %v1573 = vsel %vm1240, %v1571, %v1572
        %v1574 = vrot.slane %v1535, 4
        %v1575 = vsel %vm1240, %v1572, %v1574
        %1576 = vrot.lane.b32.xlu0 %v1573, 64
        %v1577 = vpop.permute.xlu0 %1576
        %1578 = vrot.lane.b32.xlu0 %v1575, 64
        %v1579 = vpop.permute.xlu0 %1578
        %v1582 = vsel %vm734, %v1534, %v1544
        %v1583 = vsel %vm734, %v1530, %v1546
        %v1584 = vsel %vm737, %v1582, %v1555
        %v1585 = vsel %vm737, %v1583, %v1557
        %v1586 = vsel %vm753, %v1584, %v1566
        %v1587 = vsel %vm753, %v1585, %v1568
        %v1588 = vsel %vm1258, %v1586, %v1577
        %v1589 = vsel %vm1258, %v1587, %v1579
        %v1590 = vld [vmem:[%s17] sm:$0xff]
        %v1591 = vld [vmem:[%s17 + $0x8] sm:$0xff]
        %v1592 = vld [vmem:[%s17 + $0x10] sm:$0xff]
        %v1593 = vld [vmem:[%s17 + $0x18] sm:$0xff]
        %v1594 = vld [vmem:[%s17 + $0x20] sm:$0xff]
        %v1595 = vld [vmem:[%s17 + $0x28] sm:$0xff]
        %v1596 = vld [vmem:[%s17 + $0x30] sm:$0xff]
        %v1597 = vld [vmem:[%s17 + $0x38] sm:$0xff]
        %v1598 = vld [vmem:[%s17 + $0x40] sm:$0xff]
        %v1599 = vld [vmem:[%s17 + $0x48] sm:$0xff]
        %v1600 = vld [vmem:[%s18] sm:$0x1]
        %v1602 = vlaneseq
        %v1603 = vshrl.u32 %v1602, 7
        %v1604 = vsub.s32 0, %v1603
        %v1605 = vrot.slane %v1600, %v1604
        %v1608 = vsel %vm1278, %v1588, 0
        %v1611 = vsel %vm1278, %v1589, 0
        %1613 = vmatprep.subr.mxu0 0.0
        %1614 = vmatpush1.msra.mxu0 %v1590
        %1615 = vmatprep.subr.mxu0 0.0
        %1616 = vmatpush1.msra.mxu0 %v1591
        %1617 = vmatprep.subr.mxu0 0.0
        %1618 = vmatpush1.msra.mxu0 %v1592
        %1619 = vmatprep.subr.mxu0 0.0
        %1620 = vmatpush1.msra.mxu0 %v1593
        %1621 = vmatprep.subr.mxu0 0.0
        %1622 = vmatpush1.msra.mxu0 %v1594
        %1623 = vmatprep.subr.mxu0 0.0
        %1624 = vmatpush1.msra.mxu0 %v1595
        %1625 = vmatprep.subr.mxu0 0.0
        %1626 = vmatpush1.msra.mxu0 %v1596
        %1627 = vmatprep.subr.mxu0 0.0
        %1628 = vmatpush1.msra.mxu0 %v1597
        %1629 = vmatprep.subr.mxu0 0.0
        %1630 = vmatpush1.msra.mxu0 %v1598
        %1631 = vmatprep.subr.mxu0 0.0
        %1632 = vmatpush1.msra.mxu0 %v1599
        %1633 = vmatprep.subr.mxu0 0.0
        %1634 = vmatpush1.msra.mxu0 0.0
        %1635 = vmatprep.subr.mxu0 0.0
        %1636 = vmatpush1.msra.mxu0 0.0
        %1637 = vmatprep.subr.mxu0 0.0
        %1638 = vmatpush1.msra.mxu0 0.0
        %1639 = vmatprep.subr.mxu0 0.0
        %1640 = vmatpush1.msra.mxu0 0.0
        %1641 = vmatprep.subr.mxu0 0.0
        %1642 = vmatpush1.msra.mxu0 0.0
        %1643 = vmatprep.subr.mxu0 0.0
        %1644 = vmatpush1.msra.mxu0 0.0
        %1645 = vmatprep.subr.mxu0 0.0
        %1646 = vmatpush1.msra.mxu0 0.0
        %1647 = vmatprep.subr.mxu0 0.0
        %1648 = vmatpush1.msra.mxu0 0.0
        %1649 = vmatprep.subr.mxu0 0.0
        %1650 = vmatpush1.msra.mxu0 0.0
        %1651 = vmatprep.subr.mxu0 0.0
        %1652 = vmatpush1.msra.mxu0 0.0
        %1653 = vmatprep.subr.mxu0 0.0
        %1654 = vmatpush1.msra.mxu0 0.0
        %1655 = vmatprep.subr.mxu0 0.0
        %1656 = vmatpush1.msra.mxu0 0.0
        %1657 = vmatprep.subr.mxu0 0.0
        %1658 = vmatpush1.msra.mxu0 0.0
        %1659 = vmatprep.subr.mxu0 0.0
        %1660 = vmatpush1.msra.mxu0 0.0
        %1661 = vmatprep.subr.mxu0 0.0
        %1662 = vmatpush1.msra.mxu0 0.0
        %1663 = vmatprep.subr.mxu0 0.0
        %1664 = vmatpush1.msra.mxu0 0.0
        %1665 = vmatprep.subr.mxu0 0.0
        %1666 = vmatpush1.msra.mxu0 0.0
        %1667 = vmatprep.subr.mxu0 0.0
        %1668 = vmatpush1.msra.mxu0 0.0
        %1669 = vmatprep.subr.mxu0 0.0
        %1670 = vmatpush1.msra.mxu0 0.0
        %1671 = vmatprep.subr.mxu0 0.0
        %1672 = vmatpush1.msra.mxu0 0.0
        %1673 = vmatprep.subr.mxu0 0.0
        %1674 = vmatpush1.msra.mxu0 0.0
        %1675 = vmatprep.subr.mxu0 0.0
        %1676 = vmatpush1.msra.mxu0 0.0
        %1677 = vmatprep.mubr.f32.mxu0 0.0
        %1678 = vmatmul.mubr.f32.gmra.mrb[0].mxu0 %v1608
        %v1679 = vpop.f32.mrb[0].mxu0
        %v1680 = vadd.f32 %v1605, %v1679
        %v1681 = vpop.f32.mrb[0].mxu0
        %1682 = vmatprep.mubr.f32.mxu0 0.0
        %1683 = vmatmul.mubr.f32.gmra.mrb[0].mxu0 %v1611
        %v1684 = vpop.f32.mrb[0].mxu0
        %v1685 = vadd.f32 %v1605, %v1684
        %v1686 = vpop.f32.mrb[0].mxu0
        %1687 = vdwg.mxu0
        %v1688 = vld [vmem:[%s19] sm:$0xff]
        %v1689 = vld [vmem:[%s19 + $0x8] sm:$0xff]
        %v1690 = vld [vmem:[%s20] sm:$0x1]
        %v1692 = vlaneseq
        %v1693 = vshrl.u32 %v1692, 7
        %v1694 = vsub.s32 0, %v1693
        %v1695 = vrot.slane %v1690, %v1694
        %v1697 = vsel %vm734, %v1360, 0
        %v1699 = vsel %vm734, %v1361, 0
        %1701 = vmatprep.subr.mxu0 0.0
        %1702 = vmatpush1.msra.mxu0 %v1688
        %1703 = vmatprep.subr.mxu0 0.0
        %1704 = vmatpush1.msra.mxu0 %v1689
        %1705 = vmatprep.subr.mxu0 0.0
        %1706 = vmatpush1.msra.mxu0 0.0
        %1707 = vmatprep.subr.mxu0 0.0
        %1708 = vmatpush1.msra.mxu0 0.0
        %1709 = vmatprep.subr.mxu0 0.0
        %1710 = vmatpush1.msra.mxu0 0.0
        %1711 = vmatprep.subr.mxu0 0.0
        %1712 = vmatpush1.msra.mxu0 0.0
        %1713 = vmatprep.subr.mxu0 0.0
        %1714 = vmatpush1.msra.mxu0 0.0
        %1715 = vmatprep.subr.mxu0 0.0
        %1716 = vmatpush1.msra.mxu0 0.0
        %1717 = vmatprep.subr.mxu0 0.0
        %1718 = vmatpush1.msra.mxu0 0.0
        %1719 = vmatprep.subr.mxu0 0.0
        %1720 = vmatpush1.msra.mxu0 0.0
        %1721 = vmatprep.subr.mxu0 0.0
        %1722 = vmatpush1.msra.mxu0 0.0
        %1723 = vmatprep.subr.mxu0 0.0
        %1724 = vmatpush1.msra.mxu0 0.0
        %1725 = vmatprep.subr.mxu0 0.0
        %1726 = vmatpush1.msra.mxu0 0.0
        %1727 = vmatprep.subr.mxu0 0.0
        %1728 = vmatpush1.msra.mxu0 0.0
        %1729 = vmatprep.subr.mxu0 0.0
        %1730 = vmatpush1.msra.mxu0 0.0
        %1731 = vmatprep.subr.mxu0 0.0
        %1732 = vmatpush1.msra.mxu0 0.0
        %1733 = vmatprep.subr.mxu0 0.0
        %1734 = vmatpush1.msra.mxu0 0.0
        %1735 = vmatprep.subr.mxu0 0.0
        %1736 = vmatpush1.msra.mxu0 0.0
        %1737 = vmatprep.subr.mxu0 0.0
        %1738 = vmatpush1.msra.mxu0 0.0
        %1739 = vmatprep.subr.mxu0 0.0
        %1740 = vmatpush1.msra.mxu0 0.0
        %1741 = vmatprep.subr.mxu0 0.0
        %1742 = vmatpush1.msra.mxu0 0.0
        %1743 = vmatprep.subr.mxu0 0.0
        %1744 = vmatpush1.msra.mxu0 0.0
        %1745 = vmatprep.subr.mxu0 0.0
        %1746 = vmatpush1.msra.mxu0 0.0
        %1747 = vmatprep.subr.mxu0 0.0
        %1748 = vmatpush1.msra.mxu0 0.0
        %1749 = vmatprep.subr.mxu0 0.0
        %1750 = vmatpush1.msra.mxu0 0.0
        %1751 = vmatprep.subr.mxu0 0.0
        %1752 = vmatpush1.msra.mxu0 0.0
        %1753 = vmatprep.subr.mxu0 0.0
        %1754 = vmatpush1.msra.mxu0 0.0
        %1755 = vmatprep.subr.mxu0 0.0
        %1756 = vmatpush1.msra.mxu0 0.0
        %1757 = vmatprep.subr.mxu0 0.0
        %1758 = vmatpush1.msra.mxu0 0.0
        %1759 = vmatprep.subr.mxu0 0.0
        %1760 = vmatpush1.msra.mxu0 0.0
        %1761 = vmatprep.subr.mxu0 0.0
        %1762 = vmatpush1.msra.mxu0 0.0
        %1763 = vmatprep.subr.mxu0 0.0
        %1764 = vmatpush1.msra.mxu0 0.0
        %1765 = vmatprep.mubr.f32.mxu0 0.0
        %1766 = vmatmul.mubr.f32.gmra.mrb[0].mxu0 %v1697
        %v1767 = vpop.f32.mrb[0].mxu0
        %v1768 = vadd.f32 %v1695, %v1767
        %v1769 = vpop.f32.mrb[0].mxu0
        %1770 = vmatprep.mubr.f32.mxu0 0.0
        %1771 = vmatmul.mubr.f32.gmra.mrb[0].mxu0 %v1699
        %v1772 = vpop.f32.mrb[0].mxu0
        %v1773 = vadd.f32 %v1695, %v1772
        %v1774 = vpop.f32.mrb[0].mxu0
        %1775 = vdwg.mxu0
        %v1776 = vadd.f32 %v1680, %v1768
        %v1777 = vadd.f32 %v1685, %v1773
        %v1778 = vtanh.pop %v1776
        %v1779 = vtanh.pop %v1777
        %1782 = vrot.lane.b32.xlu0 %v1778, 16
        %v1783 = vpop.permute.xlu0 %1782
        %1784 = vrot.lane.b32.xlu0 %v1779, 16
        %v1785 = vpop.permute.xlu0 %1784
        %v1788 = vsel %vm734, %v1193, %v1783
        %v1789 = vsel %vm734, %v1194, %v1785
        %v1790 = vld [vmem:[%s2] sm:$0xff]
        %v1792 = vsel %vm737, %v1790, 0
        %v1795 = vsel %vm737, %v1788, 0
        %v1798 = vsel %vm737, %v1789, 0
        %1800 = vmatprep.subr.mxu0 0.0
        %1801 = vmatpush1.xpose.msra.mxu0 %v1795
        %1802 = vmatprep.subr.mxu0 0.0
        %1803 = vmatpush1.xpose.msra.mxu0 %v1798
        %1804 = vmatprep.subr.mxu0 0.0
        %1805 = vmatpush1.xpose.msra.mxu0 0.0
        %1806 = vmatprep.subr.mxu0 0.0
        %1807 = vmatpush1.xpose.msra.mxu0 0.0
        %1808 = vmatprep.subr.mxu0 0.0
        %1809 = vmatpush1.xpose.msra.mxu0 0.0
        %1810 = vmatprep.subr.mxu0 0.0
        %1811 = vmatpush1.xpose.msra.mxu0 0.0
        %1812 = vmatprep.subr.mxu0 0.0
        %1813 = vmatpush1.xpose.msra.mxu0 0.0
        %1814 = vmatprep.subr.mxu0 0.0
        %1815 = vmatpush1.xpose.msra.mxu0 0.0
        %1816 = vmatprep.subr.mxu0 0.0
        %1817 = vmatpush1.xpose.msra.mxu0 0.0
        %1818 = vmatprep.subr.mxu0 0.0
        %1819 = vmatpush1.xpose.msra.mxu0 0.0
        %1820 = vmatprep.subr.mxu0 0.0
        %1821 = vmatpush1.xpose.msra.mxu0 0.0
        %1822 = vmatprep.subr.mxu0 0.0
        %1823 = vmatpush1.xpose.msra.mxu0 0.0
        %1824 = vmatprep.subr.mxu0 0.0
        %1825 = vmatpush1.xpose.msra.mxu0 0.0
        %1826 = vmatprep.subr.mxu0 0.0
        %1827 = vmatpush1.xpose.msra.mxu0 0.0
        %1828 = vmatprep.subr.mxu0 0.0
        %1829 = vmatpush1.xpose.msra.mxu0 0.0
        %1830 = vmatprep.subr.mxu0 0.0
        %1831 = vmatpush1.xpose.msra.mxu0 0.0
        %1832 = vmatprep.subr.mxu0 0.0
        %1833 = vmatpush1.xpose.msra.mxu0 0.0
        %1834 = vmatprep.subr.mxu0 0.0
        %1835 = vmatpush1.xpose.msra.mxu0 0.0
        %1836 = vmatprep.subr.mxu0 0.0
        %1837 = vmatpush1.xpose.msra.mxu0 0.0
        %1838 = vmatprep.subr.mxu0 0.0
        %1839 = vmatpush1.xpose.msra.mxu0 0.0
        %1840 = vmatprep.subr.mxu0 0.0
        %1841 = vmatpush1.xpose.msra.mxu0 0.0
        %1842 = vmatprep.subr.mxu0 0.0
        %1843 = vmatpush1.xpose.msra.mxu0 0.0
        %1844 = vmatprep.subr.mxu0 0.0
        %1845 = vmatpush1.xpose.msra.mxu0 0.0
        %1846 = vmatprep.subr.mxu0 0.0
        %1847 = vmatpush1.xpose.msra.mxu0 0.0
        %1848 = vmatprep.subr.mxu0 0.0
        %1849 = vmatpush1.xpose.msra.mxu0 0.0
        %1850 = vmatprep.subr.mxu0 0.0
        %1851 = vmatpush1.xpose.msra.mxu0 0.0
        %1852 = vmatprep.subr.mxu0 0.0
        %1853 = vmatpush1.xpose.msra.mxu0 0.0
        %1854 = vmatprep.subr.mxu0 0.0
        %1855 = vmatpush1.xpose.msra.mxu0 0.0
        %1856 = vmatprep.subr.mxu0 0.0
        %1857 = vmatpush1.xpose.msra.mxu0 0.0
        %1858 = vmatprep.subr.mxu0 0.0
        %1859 = vmatpush1.xpose.msra.mxu0 0.0
        %1860 = vmatprep.subr.mxu0 0.0
        %1861 = vmatpush1.xpose.msra.mxu0 0.0
        %1862 = vmatprep.subr.mxu0 0.0
        %1863 = vmatpush1.xpose.msra.mxu0 0.0
        %1864 = vmatprep.mubr.f32.mxu0 0.0
        %1865 = vmatmul.mubr.f32.gmra.mrb[0].mxu0 %v1792
        %v1866 = vpop.f32.mrb[0].mxu0
        %v1867 = vadd.f32 0.0, %v1866
        %v1868 = vpop.f32.mrb[0].mxu0
        %1869 = vdwg.mxu0
        %v1870 = vsel %vm734, %v1867, -inf
        %1871 = vmax.xlane.f32.xlu0 %v1870
        %v1872 = vpop.xlane.xlu0 %1871
        %v1873 = vsub.f32 %v1867, %v1872
        %v1874 = vmul.f32 %v1873, 1.442695
        %v1875 = vpow.pop %v1874
        %v1876 = vsel %vm734, %v1875, 0.0
        %1877 = vadd.xlane.f32.xlu0 %v1876
        %v1878 = vpop.xlane.xlu0 %1877
        %v1879 = vrcp.pop %v1878
        %v1880 = vmul.f32 %v1875, %v1879
        %v1882 = vsel %vm734, %v1880, 0
        %1884 = vmatprep.subr.mxu0 0.0
        %1885 = vmatpush1.msra.mxu0 %v1788
        %1886 = vmatprep.subr.mxu0 0.0
        %1887 = vmatpush1.msra.mxu0 %v1789
        %1888 = vmatprep.subr.mxu0 0.0
        %1889 = vmatpush1.msra.mxu0 0.0
        %1890 = vmatprep.subr.mxu0 0.0
        %1891 = vmatpush1.msra.mxu0 0.0
        %1892 = vmatprep.subr.mxu0 0.0
        %1893 = vmatpush1.msra.mxu0 0.0
        %1894 = vmatprep.subr.mxu0 0.0
        %1895 = vmatpush1.msra.mxu0 0.0
        %1896 = vmatprep.subr.mxu0 0.0
        %1897 = vmatpush1.msra.mxu0 0.0
        %1898 = vmatprep.subr.mxu0 0.0
        %1899 = vmatpush1.msra.mxu0 0.0
        %1900 = vmatprep.subr.mxu0 0.0
        %1901 = vmatpush1.msra.mxu0 0.0
        %1902 = vmatprep.subr.mxu0 0.0
        %1903 = vmatpush1.msra.mxu0 0.0
        %1904 = vmatprep.subr.mxu0 0.0
        %1905 = vmatpush1.msra.mxu0 0.0
        %1906 = vmatprep.subr.mxu0 0.0
        %1907 = vmatpush1.msra.mxu0 0.0
        %1908 = vmatprep.subr.mxu0 0.0
        %1909 = vmatpush1.msra.mxu0 0.0
        %1910 = vmatprep.subr.mxu0 0.0
        %1911 = vmatpush1.msra.mxu0 0.0
        %1912 = vmatprep.subr.mxu0 0.0
        %1913 = vmatpush1.msra.mxu0 0.0
        %1914 = vmatprep.subr.mxu0 0.0
        %1915 = vmatpush1.msra.mxu0 0.0
        %1916 = vmatprep.subr.mxu0 0.0
        %1917 = vmatpush1.msra.mxu0 0.0
        %1918 = vmatprep.subr.mxu0 0.0
        %1919 = vmatpush1.msra.mxu0 0.0
        %1920 = vmatprep.subr.mxu0 0.0
        %1921 = vmatpush1.msra.mxu0 0.0
        %1922 = vmatprep.subr.mxu0 0.0
        %1923 = vmatpush1.msra.mxu0 0.0
        %1924 = vmatprep.subr.mxu0 0.0
        %1925 = vmatpush1.msra.mxu0 0.0
        %1926 = vmatprep.subr.mxu0 0.0
        %1927 = vmatpush1.msra.mxu0 0.0
        %1928 = vmatprep.subr.mxu0 0.0
        %1929 = vmatpush1.msra.mxu0 0.0
        %1930 = vmatprep.subr.mxu0 0.0
        %1931 = vmatpush1.msra.mxu0 0.0
        %1932 = vmatprep.subr.mxu0 0.0
        %1933 = vmatpush1.msra.mxu0 0.0
        %1934 = vmatprep.subr.mxu0 0.0
        %1935 = vmatpush1.msra.mxu0 0.0
        %1936 = vmatprep.subr.mxu0 0.0
        %1937 = vmatpush1.msra.mxu0 0.0
        %1938 = vmatprep.subr.mxu0 0.0
        %1939 = vmatpush1.msra.mxu0 0.0
        %1940 = vmatprep.subr.mxu0 0.0
        %1941 = vmatpush1.msra.mxu0 0.0
        %1942 = vmatprep.subr.mxu0 0.0
        %1943 = vmatpush1.msra.mxu0 0.0
        %1944 = vmatprep.subr.mxu0 0.0
        %1945 = vmatpush1.msra.mxu0 0.0
        %1946 = vmatprep.subr.mxu0 0.0
        %1947 = vmatpush1.msra.mxu0 0.0
        %1948 = vmatprep.mubr.f32.mxu0 0.0
        %1949 = vmatmul.mubr.f32.gmra.mrb[0].mxu0 %v1882
        %v1950 = vpop.f32.mrb[0].mxu0
        %v1951 = vadd.f32 0.0, %v1950
        %v1952 = vpop.f32.mrb[0].mxu0
        %1953 = vdwg.mxu0
        %v1954 = vld [vmem:[%s3] sm:$0xff]
        %v1955 = vmul.f32 %v1954, %v1951
        %v1956 = vsel %vm737, %v1955, 0.0
        %1957 = vadd.xlane.f32.xlu0 %v1956
        %v1958 = vpop.xlane.xlu0 %1957
        %v1959 = vld [vmem:[%s4] sm:$0x1]
        %v1961 = vlaneseq
        %v1962 = vshrl.u32 %v1961, 7
        %v1963 = vsub.s32 0, %v1962
        %v1964 = vrot.slane %v1959, %v1963
        %1966 = vbcast.lane.b32.xlu0 %v1964, 256
        %v1967 = vpop.permute.xlu0 %1966
        %v1969 = vadd.f32 %v1958, %v1967
        %1971 = vset.pattern.permute.xlu0 0
        %1972 = vperm.xlu0 %1971, %v1969
        %v1973 = vpop.permute.xlu0 %1972
        %v1974 = vlaneseq
        %v1975 = vand.u32 %v1974, 127
        %v1976 = vlaneseq
        %v1977 = vshrl.u32 %v1976, 7
        %v1978 = vsub.s32 %v1975, %v1977
        %v1979 = vrot.slane %v1973, %v1978
        %vm1981 = vcmask 57344
        %1982 = vst.msk [vmem:[%s613] sm:$0x1] %vm1981, %v1979
        %s1983 = sand.u32 %s469, 1
        %s1984 = scalar_lea.sflag [#allocation6], %s1983
        %s1985 = sand.u32 %s469, 1
        %s1986 = scalar_lea.vmem [#allocation5], %s1985
        // Predicated region
        $region101: #{multirescnn_pallas.1} parent=99 // pred_check
          %p1987 = pneg %p479
        $region102: #{multirescnn_pallas.1} parent=99 // pred_check_branch
          %1989 = sbr.rel (%p1987) target = $region104
        $region103: #{multirescnn_pallas.1} parent=99 // pred_region
          %s1991 = ssub.s32 16, 16
          %1992 = vsyncadd %s1984, %s1991
          %s1993 = smul.addr %s41, 16
          %s1994 = scalar_lea.hbm %s21, %s1993
          %s1996 = sshll.u32 %s1986, 4
          %s1997 = int_to_ptr.vmem [resolvable:$true] %s1996
          %1999 = dma.vmem_to_hbm [thread:$0]  %s1997, 16, %s1994, %s1984
        $region104: #{multirescnn_pallas.1} parent=99 // pred_fallthru
          _
      $region100: #{multirescnn_pallas.1} parent=5 // pred_fallthru
        _
      %p2000 = scmp.le.s32.totalorder 2, %s36
      // Predicated region
      $region105: #{multirescnn_pallas.1} parent=5 // pred_check
        %p2001 = pneg %p2000
      $region106: #{multirescnn_pallas.1} parent=5 // pred_check_branch
        %2003 = sbr.rel (%p2001) target = $region108
      $region107: #{multirescnn_pallas.1} parent=5 // pred_region
        %s2004 = ssub.s32 %s36, 2
        // Predicated region
        $region109: #{multirescnn_pallas.1} parent=107 // pred_check
          %p2005 = pneg %p485
        $region110: #{multirescnn_pallas.1} parent=107 // pred_check_branch
          %2007 = sbr.rel (%p2005) target = $region112
        $region111: #{multirescnn_pallas.1} parent=107 // pred_region
          %s2008 = sand.u32 %s470, 1
          %s2009 = scalar_lea.sflag [#allocation6], %s2008
          %s2010 = sand.u32 %s470, 1
          %s2011 = scalar_lea.vmem [#allocation5], %s2010
          %2012 = dma.done %s2009, 16
        $region112: #{multirescnn_pallas.1} parent=107 // pred_fallthru
          _
      $region108: #{multirescnn_pallas.1} parent=5 // pred_fallthru
        _
    $region6: #{multirescnn_pallas.1} parent=1 // loop_footer
      %s40 = sadd.s32 1, %s36
    $region7: #{multirescnn_pallas.1} parent=1 // loop_footer_branch
      %35 = sbr.rel target = $region3
    $region8: #{multirescnn_pallas.1} parent=1 // loop_exit
      _
    %2013 = vsyncpa [#allocation6], 1
    %s2014 = scalar_lea.sflag [#allocation6], 1
    %2015 = vsyncpa %s2014, 1

</llo_original>
